<compile_context>
chip_gen: v6e
topology: v6e:2x2x1
jax: 0.10.0
libtpu: 0.0.40
codegen_flags: <defaults>
</compile_context>

<pallas_src>
import jax
import jax.numpy as jnp
from jax.experimental import pallas as pl
from jax.experimental.pallas import tpu as pltpu


def _round_up(x, m):
    return (x + m - 1) // m * m


# -----------------------------------------------------------------------------
# Kernels
# -----------------------------------------------------------------------------
def sage_layer1_fused_kernel(a_ref, x_self_ref, x_all_ref, inv_deg_ref,
                             w_self1_ref, w_neigh1_ref, b1_ref,
                             w_self2_ref, w_neigh2_ref, b2_ref,
                             self2_ref, nt_ref, acc_ref):
    """Layer 1 (SAGEConv + ReLU) fused with layer 2's row-local projections.

    Grid = (row tiles, adjacency-column k-tiles).  Per (i, k):
      acc += A[i, k] @ X[k]                       (unnormalized neighbor sum)
    At k == last:
      neigh = inv_deg[i] * acc                    (exact f32 mean scaling)
      h     = relu(X[i] @ Wself1 + neigh @ Wneigh1 + b1)
      self2 = h @ Wself2 + b2                     (layer-2 self branch, fused)
      nt    = h @ Wneigh2                         (layer-2 neighbor table, fused)
    """
    k = pl.program_id(1)

    @pl.when(k == 0)
    def _init():
        acc_ref[...] = jnp.zeros_like(acc_ref)

    # A is {0,1} (bf16 by default): promoting it to the feature dtype is exact.
    acc_ref[...] += jnp.dot(a_ref[...].astype(x_all_ref.dtype), x_all_ref[...],
                            preferred_element_type=jnp.float32)

    @pl.when(k == pl.num_programs(1) - 1)
    def _epilogue():
        neigh = inv_deg_ref[...] * acc_ref[...]          # exact f32 mean
        wdt = w_self1_ref.dtype
        h = (jnp.dot(x_self_ref[...], w_self1_ref[...],
                     preferred_element_type=jnp.float32)
             + jnp.dot(neigh.astype(wdt), w_neigh1_ref[...],
                       preferred_element_type=jnp.float32)
             + b1_ref[...])
        h = jnp.maximum(h, 0.0)                          # ReLU between layers
        h_c = h.astype(w_self2_ref.dtype)
        # Cross-layer fusion: project into layer 2's narrow width while the row
        # tile is still in VMEM (layer 2 then aggregates an [N, out_feats]
        # table instead of the [N, hidden] activations).
        self2_ref[...] = (jnp.dot(h_c, w_self2_ref[...],
                                  preferred_element_type=jnp.float32)
                          + b2_ref[...]).astype(self2_ref.dtype)
        nt_ref[...] = jnp.dot(h_c, w_neigh2_ref[...],
                              preferred_element_type=jnp.float32
                              ).astype(nt_ref.dtype)


def sage_layer2_aggregate_kernel(a_ref, nt_ref, self2_ref, inv_deg_ref,
                                 o_ref, acc_ref):
    """Layer 2 reduces to: out = self2 + inv_deg * (A @ nt)   (k-tiled)."""
    k = pl.program_id(1)

    @pl.when(k == 0)
    def _init():
        acc_ref[...] = jnp.zeros_like(acc_ref)

    acc_ref[...] += jnp.dot(a_ref[...].astype(nt_ref.dtype), nt_ref[...],
                            preferred_element_type=jnp.float32)

    @pl.when(k == pl.num_programs(1) - 1)
    def _epilogue():
        o_ref[...] = (self2_ref[...] + inv_deg_ref[...] * acc_ref[...]
                      ).astype(o_ref.dtype)


# -----------------------------------------------------------------------------
# Tiling plan (generation aware)
# -----------------------------------------------------------------------------
def _device_defaults():
    """Tile hints + scoped-VMEM budget per TPU generation."""
    vmem_bytes = 64 * 1024 * 1024
    try:
        vmem_bytes = int(pltpu.get_tpu_info().vmem_capacity_bytes)
    except Exception:
        pass
    if vmem_bytes >= 96 * 1024 * 1024:
        # v5e / v6e: 128 MiB VMEM -> big tiles, generous scoped budget.
        return 1024, 1024, 100 * 1024 * 1024
    # v7x: 64 MiB per TensorCore -> cap budget and tile hints.
    return 512, 512, 44 * 1024 * 1024


def _plan_tiles(num_nodes, f_in, tile_n, tile_k, compute_dtype, adj_dtype,
                vmem_limit):
    """Dtype-aligned tiles that fit the VMEM budget and keep the parallel row
    grid long enough to feed both TensorCores on megacore parts."""
    adj_b = jnp.dtype(adj_dtype).itemsize
    x_b = jnp.dtype(compute_dtype).itemsize
    row_align = 8 if (adj_b == 4 and x_b == 4) else 16     # f32: 8, bf16: 16

    tile_k = max(128, min(tile_k, _round_up(num_nodes, 128)) // 128 * 128)
    tile_n = max(row_align,
                 min(tile_n, _round_up(num_nodes, row_align))
                 // row_align * row_align)

    def vmem_est(tn, tk):
        # 2x double-buffered A tile + 2x feature k-tile + 2x row-resident
        # features/inv_deg + f32 accumulator + slack for weights/outputs.
        return (2 * tn * tk * adj_b + 2 * tk * f_in * x_b
                + 2 * tn * f_in * x_b + 2 * tn * 4 + tn * f_in * 4
                + (1 << 20))

    while vmem_est(tile_n, tile_k) > vmem_limit // 2 and tile_k > 128:
        tile_k = max(128, tile_k // 2 // 128 * 128)
    while vmem_est(tile_n, tile_k) > vmem_limit // 2 and tile_n > row_align:
        tile_n = max(row_align, tile_n // 2 // row_align * row_align)

    n_pad = _round_up(num_nodes, tile_k)
    tile_n = max(row_align, min(tile_n, n_pad) // row_align * row_align)
    while n_pad % tile_n:
        tile_n -= row_align

    # Keep the "parallel" row grid >= 4 steps so both TCs get work (v7x).
    while (n_pad // tile_n < 4 and tile_n >= 2 * row_align
           and (tile_n // 2) % row_align == 0):
        tile_n //= 2
    return n_pad, tile_n, tile_k


# -----------------------------------------------------------------------------
# Graph construction (padded once, shared by both layers)
# -----------------------------------------------------------------------------
def build_graph(src, dst, num_nodes, n_pad, adj_dtype=jnp.bfloat16):
    """Padded {0,1} adjacency (edge src->dst => A[dst, src]) + 1/in_degree."""
    a01 = jnp.zeros((n_pad, n_pad), jnp.float32)
    a01 = a01.at[dst, src].add(1.0)          # multi-edges counted like DGL mean
    deg = a01.sum(axis=1, keepdims=True)
    inv_deg = jnp.where(deg > 0, 1.0 / jnp.maximum(deg, 1.0), 0.0)
    # Small integer edge multiplicities are exactly representable in bf16.
    return a01.astype(adj_dtype), inv_deg.astype(jnp.float32)


# -----------------------------------------------------------------------------
# pallas_call wrappers
# -----------------------------------------------------------------------------
def _sage_layer1_call(a01, x, inv_deg, w_self1, w_neigh1, b1,
                      w_self2, w_neigh2, b2, *, tile_n, tile_k, vmem_limit,
                      compute_dtype):
    n_pad, f_in = x.shape
    hidden = w_self1.shape[1]
    f_out = w_self2.shape[1]
    grid = (n_pad // tile_n, n_pad // tile_k)
    return pl.pallas_call(
        sage_layer1_fused_kernel,
        out_shape=(jax.ShapeDtypeStruct((n_pad, f_out), jnp.float32),   # self2+b2
                   jax.ShapeDtypeStruct((n_pad, f_out), compute_dtype)),  # nt
        grid=grid,
        in_specs=[
            pl.BlockSpec((tile_n, tile_k), lambda i, k: (i, k)),  # A (streamed)
            pl.BlockSpec((tile_n, f_in), lambda i, k: (i, 0)),    # self features
            pl.BlockSpec((tile_k, f_in), lambda i, k: (k, 0)),    # feature k-tile
            pl.BlockSpec((tile_n, 1), lambda i, k: (i, 0)),       # 1/in_degree
            pl.BlockSpec((f_in, hidden), lambda i, k: (0, 0)),    # W_self1^T
            pl.BlockSpec((f_in, hidden), lambda i, k: (0, 0)),    # W_neigh1^T
            pl.BlockSpec((1, hidden), lambda i, k: (0, 0)),       # b1
            pl.BlockSpec((hidden, f_out), lambda i, k: (0, 0)),   # W_self2^T
            pl.BlockSpec((hidden, f_out), lambda i, k: (0, 0)),   # W_neigh2^T
            pl.BlockSpec((1, f_out), lambda i, k: (0, 0)),        # b2
        ],
        out_specs=(
            pl.BlockSpec((tile_n, f_out), lambda i, k: (i, 0)),
            pl.BlockSpec((tile_n, f_out), lambda i, k: (i, 0)),
        ),
        scratch_shapes=[pltpu.VMEM((tile_n, f_in), jnp.float32)],
        compiler_params=pltpu.CompilerParams(
            dimension_semantics=("parallel", "arbitrary"),
            vmem_limit_bytes=vmem_limit,
        ),
    )(a01, x, x, inv_deg, w_self1, w_neigh1, b1, w_self2, w_neigh2, b2)


def _sage_layer2_call(a01, nt, self2, inv_deg, *, tile_n, tile_k, vmem_limit):
    n_pad, f_out = nt.shape
    grid = (n_pad // tile_n, n_pad // tile_k)
    return pl.pallas_call(
        sage_layer2_aggregate_kernel,
        out_shape=jax.ShapeDtypeStruct((n_pad, f_out), jnp.float32),
        grid=grid,
        in_specs=[
            pl.BlockSpec((tile_n, tile_k), lambda i, k: (i, k)),  # A (streamed)
            pl.BlockSpec((tile_k, f_out), lambda i, k: (k, 0)),   # nt k-tile
            pl.BlockSpec((tile_n, f_out), lambda i, k: (i, 0)),   # self branch
            pl.BlockSpec((tile_n, 1), lambda i, k: (i, 0)),       # 1/in_degree
        ],
        out_specs=pl.BlockSpec((tile_n, f_out), lambda i, k: (i, 0)),
        scratch_shapes=[pltpu.VMEM((tile_n, f_out), jnp.float32)],
        compiler_params=pltpu.CompilerParams(
            dimension_semantics=("parallel", "arbitrary"),
            vmem_limit_bytes=vmem_limit,
        ),
    )(a01, nt, self2, inv_deg)


def graphsage_forward(src, dst, num_nodes, features, params, *,
                      tile_n=None, tile_k=None,
                      compute_dtype=jnp.float32, adj_dtype=jnp.bfloat16):
    """GraphSAGE.forward: conv2(g, relu(conv1(g, features)))."""
    f_in = features.shape[1]
    tn_def, tk_def, vmem_limit = _device_defaults()
    tile_n = tile_n or tn_def
    tile_k = tile_k or tk_def
    n_pad, tile_n, tile_k = _plan_tiles(num_nodes, f_in, tile_n, tile_k,
                                        compute_dtype, adj_dtype, vmem_limit)

    # Padded graph tensors / features built ONCE per forward, shared by layers.
    a01, inv_deg = build_graph(src, dst, num_nodes, n_pad, adj_dtype)
    x = jnp.zeros((n_pad, f_in), compute_dtype).at[:num_nodes].set(
        features.astype(compute_dtype))

    cdt = compute_dtype
    w_self1 = params["w_self1"].T.astype(cdt)     # [f_in, hidden]
    w_neigh1 = params["w_neigh1"].T.astype(cdt)
    b1 = params["b1"].reshape(1, -1).astype(jnp.float32)
    w_self2 = params["w_self2"].T.astype(cdt)     # [hidden, out]
    w_neigh2 = params["w_neigh2"].T.astype(cdt)
    b2 = params["b2"].reshape(1, -1).astype(jnp.float32)

    self2, nt = _sage_layer1_call(a01, x, inv_deg, w_self1, w_neigh1, b1,
                                  w_self2, w_neigh2, b2,
                                  tile_n=tile_n, tile_k=tile_k,
                                  vmem_limit=vmem_limit, compute_dtype=cdt)
    out = _sage_layer2_call(a01, nt, self2, inv_deg,
                            tile_n=tile_n, tile_k=tile_k,
                            vmem_limit=vmem_limit)
    return out[:num_nodes]


def init_params(key, in_feats, hidden_size, out_feats):
    """Synthetic init matching the SAGEConv linear/bias parameter shapes."""
    ks = jax.random.split(key, 6)
    lim1 = 1.0 / jnp.sqrt(in_feats)
    lim2 = 1.0 / jnp.sqrt(hidden_size)
    return {
        "w_self1":  jax.random.uniform(ks[0], (hidden_size, in_feats), jnp.float32, -lim1, lim1),
        "w_neigh1": jax.random.uniform(ks[1], (hidden_size, in_feats), jnp.float32, -lim1, lim1),
        "b1":       jax.random.uniform(ks[2], (hidden_size,), jnp.float32, -lim1, lim1),
        "w_self2":  jax.random.uniform(ks[3], (out_feats, hidden_size), jnp.float32, -lim2, lim2),
        "w_neigh2": jax.random.uniform(ks[4], (out_feats, hidden_size), jnp.float32, -lim2, lim2),
        "b2":       jax.random.uniform(ks[5], (out_feats,), jnp.float32, -lim2, lim2),
    }


if __name__ == "__main__":
    key = jax.random.PRNGKey(0)
    k_feat, k_src, k_dst, k_params = jax.random.split(key, 4)

    num_nodes = 300          # not a tile multiple -> exercises row/col padding
    num_edges = 1200
    in_feats = 16
    hidden_size = 32
    out_feats = 4

    features = jax.random.normal(k_feat, (num_nodes, in_feats), jnp.float32)
    src = jax.random.randint(k_src, (num_edges,), 0, num_nodes, jnp.int32)
    dst = jax.random.randint(k_dst, (num_edges,), 0, num_nodes, jnp.int32)
    params = init_params(k_params, in_feats, hidden_size, out_feats)

    # Small explicit tiles so the demo exercises a real (row x k) grid:
    # n_pad=384 -> grid (6, 3).  Production sizes use _device_defaults().
    out = graphsage_forward(src, dst, num_nodes, features, params,
                            tile_n=64, tile_k=128)
    jax.block_until_ready(out)

    # Pure-JAX reference of the original composition conv2(g, relu(conv1(g,x))).
    a01 = jnp.zeros((num_nodes, num_nodes), jnp.float32).at[dst, src].add(1.0)
    deg = a01.sum(axis=1, keepdims=True)
    a_norm = jnp.where(deg > 0, a01 / jnp.maximum(deg, 1.0), 0.0)
    h1 = jnp.maximum(features @ params["w_self1"].T
                     + (a_norm @ features) @ params["w_neigh1"].T + params["b1"], 0.0)
    ref = (h1 @ params["w_self2"].T
           + (a_norm @ h1) @ params["w_neigh2"].T + params["b2"])

    assert out.shape == (num_nodes, out_feats)
    # Tolerance covers TPU default (bf16) matmul precision plus the kernel's
    # mathematically-exact but reordered A@(h@W) computation; a semantic bug
    # would be off by O(1).
    assert jnp.allclose(out, ref, atol=4e-2, rtol=4e-2), float(
        jnp.max(jnp.abs(out - ref)))

    # bf16 activation/weight path (extra HBM-bandwidth lever, esp. on v5e);
    # accumulation, inv-degree scaling, bias add and ReLU stay f32.
    out_bf16 = graphsage_forward(src, dst, num_nodes, features, params,
                                 tile_n=64, tile_k=128,
                                 compute_dtype=jnp.bfloat16)
    jax.block_until_ready(out_bf16)
    assert jnp.allclose(out_bf16, ref, atol=2e-1, rtol=2e-1), float(
        jnp.max(jnp.abs(out_bf16 - ref)))

    print("KERNEL_OK")
</pallas_src>

<mosaic_0001>
module attributes {stable_mosaic.version = 11 : i64} {
  func.func @sage_layer1_fused_kernel(%arg0: i32, %arg1: i32, %arg2: memref<64x128xbf16, #tpu.memory_space<vmem>>, %arg3: memref<64x16xf32, #tpu.memory_space<vmem>>, %arg4: memref<128x16xf32, #tpu.memory_space<vmem>>, %arg5: memref<64x1xf32, #tpu.memory_space<vmem>>, %arg6: memref<16x32xf32, #tpu.memory_space<vmem>>, %arg7: memref<16x32xf32, #tpu.memory_space<vmem>>, %arg8: memref<1x32xf32, #tpu.memory_space<vmem>>, %arg9: memref<32x4xf32, #tpu.memory_space<vmem>>, %arg10: memref<32x4xf32, #tpu.memory_space<vmem>>, %arg11: memref<1x4xf32, #tpu.memory_space<vmem>>, %arg12: memref<64x4xf32, #tpu.memory_space<vmem>>, %arg13: memref<64x4xf32, #tpu.memory_space<vmem>>, %arg14: memref<64x16xf32, #tpu.memory_space<vmem>>) attributes {dimension_semantics = [#tpu.dimension_semantics<parallel>, #tpu.dimension_semantics<arbitrary>], iteration_bounds = array<i64: 6, 3>, scalar_prefetch = 0 : i64, scratch_operands = 1 : i64, tpu.core_type = #tpu.core_type<tc>, window_params = [{transform_indices = @transform_0, window_bounds = array<i64: 64, 128>}, {transform_indices = @transform_1, window_bounds = array<i64: 64, 16>}, {transform_indices = @transform_2, window_bounds = array<i64: 128, 16>}, {transform_indices = @transform_3, window_bounds = array<i64: 64, 1>}, {pipeline_mode = #tpu.pipeline_mode<synchronous>, transform_indices = @transform_4, window_bounds = array<i64: 16, 32>}, {pipeline_mode = #tpu.pipeline_mode<synchronous>, transform_indices = @transform_5, window_bounds = array<i64: 16, 32>}, {pipeline_mode = #tpu.pipeline_mode<synchronous>, transform_indices = @transform_6, window_bounds = array<i64: 1, 32>}, {pipeline_mode = #tpu.pipeline_mode<synchronous>, transform_indices = @transform_7, window_bounds = array<i64: 32, 4>}, {pipeline_mode = #tpu.pipeline_mode<synchronous>, transform_indices = @transform_8, window_bounds = array<i64: 32, 4>}, {pipeline_mode = #tpu.pipeline_mode<synchronous>, transform_indices = @transform_9, window_bounds = array<i64: 1, 4>}, {transform_indices = @transform_10, window_bounds = array<i64: 64, 4>}, {transform_indices = @transform_11, window_bounds = array<i64: 64, 4>}]} {
    %c0_i32 = arith.constant 0 : i32
    %0 = arith.cmpi eq, %arg1, %c0_i32 : i32
    %1 = arith.extui %0 : i1 to i32
    %c0_i32_0 = arith.constant 0 : i32
    %2 = arith.cmpi ne, %1, %c0_i32_0 : i32
    scf.if %2 {
      %cst_9 = arith.constant 0.000000e+00 : f32
      %13 = vector.broadcast %cst_9 : f32 to vector<64x16xf32>
      %c0_10 = arith.constant 0 : index
      %c0_11 = arith.constant 0 : index
      %14 = vector.load %arg14[%c0_10, %c0_11] : memref<64x16xf32, #tpu.memory_space<vmem>>, vector<64x16xf32>
      tpu.vector_store %arg14[%c0_10, %c0_11], %13 {strides = array<i32>} : memref<64x16xf32, #tpu.memory_space<vmem>>, vector<64x16xf32>,
    } else {
    }
    %c0 = arith.constant 0 : index
    %c0_1 = arith.constant 0 : index
    %3 = vector.load %arg14[%c0, %c0_1] : memref<64x16xf32, #tpu.memory_space<vmem>>, vector<64x16xf32>
    %c0_2 = arith.constant 0 : index
    %c0_3 = arith.constant 0 : index
    %4 = vector.load %arg2[%c0_2, %c0_3] : memref<64x128xbf16, #tpu.memory_space<vmem>>, vector<64x128xbf16>
    %5 = arith.extf %4 : vector<64x128xbf16> to vector<64x128xf32>
    %c0_4 = arith.constant 0 : index
    %c0_5 = arith.constant 0 : index
    %6 = vector.load %arg4[%c0_4, %c0_5] : memref<128x16xf32, #tpu.memory_space<vmem>>, vector<128x16xf32>
    %cst = arith.constant dense<0.000000e+00> : vector<64x16xf32>
    %7 = tpu.matmul %5, %6, %cst {dimension_numbers = #tpu.dot_dimension_numbers<[1], [0], [0], [1], [0, 0, 1, 1], [], []>} : vector<64x128xf32>, vector<128x16xf32>, vector<64x16xf32> -> vector<64x16xf32>
    %8 = arith.addf %3, %7 : vector<64x16xf32>
    %c0_6 = arith.constant 0 : index
    %c0_7 = arith.constant 0 : index
    %9 = vector.load %arg14[%c0_6, %c0_7] : memref<64x16xf32, #tpu.memory_space<vmem>>, vector<64x16xf32>
    tpu.vector_store %arg14[%c0_6, %c0_7], %8 {strides = array<i32>} : memref<64x16xf32, #tpu.memory_space<vmem>>, vector<64x16xf32>,
    %c2_i32 = arith.constant 2 : i32
    %10 = arith.cmpi eq, %arg1, %c2_i32 : i32
    %11 = arith.extui %10 : i1 to i32
    %c0_i32_8 = arith.constant 0 : i32
    %12 = arith.cmpi ne, %11, %c0_i32_8 : i32
    scf.if %12 {
      %c0_9 = arith.constant 0 : index
      %c0_10 = arith.constant 0 : index
      %13 = vector.load %arg5[%c0_9, %c0_10] : memref<64x1xf32, #tpu.memory_space<vmem>>, vector<64x1xf32>
      %c0_11 = arith.constant 0 : index
      %c0_12 = arith.constant 0 : index
      %14 = vector.load %arg14[%c0_11, %c0_12] : memref<64x16xf32, #tpu.memory_space<vmem>>, vector<64x16xf32>
      %15 = vector.broadcast %13 : vector<64x1xf32> to vector<64x16xf32>
      %16 = arith.mulf %15, %14 : vector<64x16xf32>
      %c0_13 = arith.constant 0 : index
      %c0_14 = arith.constant 0 : index
      %17 = vector.load %arg3[%c0_13, %c0_14] : memref<64x16xf32, #tpu.memory_space<vmem>>, vector<64x16xf32>
      %c0_15 = arith.constant 0 : index
      %c0_16 = arith.constant 0 : index
      %18 = vector.load %arg6[%c0_15, %c0_16] : memref<16x32xf32, #tpu.memory_space<vmem>>, vector<16x32xf32>
      %cst_17 = arith.constant dense<0.000000e+00> : vector<64x32xf32>
      %19 = tpu.matmul %17, %18, %cst_17 {dimension_numbers = #tpu.dot_dimension_numbers<[1], [0], [0], [1], [0, 0, 1, 1], [], []>} : vector<64x16xf32>, vector<16x32xf32>, vector<64x32xf32> -> vector<64x32xf32>
      %c0_18 = arith.constant 0 : index
      %c0_19 = arith.constant 0 : index
      %20 = vector.load %arg7[%c0_18, %c0_19] : memref<16x32xf32, #tpu.memory_space<vmem>>, vector<16x32xf32>
      %cst_20 = arith.constant dense<0.000000e+00> : vector<64x32xf32>
      %21 = tpu.matmul %16, %20, %cst_20 {dimension_numbers = #tpu.dot_dimension_numbers<[1], [0], [0], [1], [0, 0, 1, 1], [], []>} : vector<64x16xf32>, vector<16x32xf32>, vector<64x32xf32> -> vector<64x32xf32>
      %22 = arith.addf %19, %21 : vector<64x32xf32>
      %c0_21 = arith.constant 0 : index
      %c0_22 = arith.constant 0 : index
      %23 = vector.load %arg8[%c0_21, %c0_22] : memref<1x32xf32, #tpu.memory_space<vmem>>, vector<1x32xf32>
      %24 = vector.broadcast %23 : vector<1x32xf32> to vector<64x32xf32>
      %25 = arith.addf %22, %24 : vector<64x32xf32>
      %cst_23 = arith.constant 0.000000e+00 : f32
      %26 = vector.broadcast %cst_23 : f32 to vector<64x32xf32>
      %27 = arith.maximumf %25, %26 : vector<64x32xf32>
      %c0_24 = arith.constant 0 : index
      %c0_25 = arith.constant 0 : index
      %28 = vector.load %arg9[%c0_24, %c0_25] : memref<32x4xf32, #tpu.memory_space<vmem>>, vector<32x4xf32>
      %cst_26 = arith.constant dense<0.000000e+00> : vector<64x4xf32>
      %29 = tpu.matmul %27, %28, %cst_26 {dimension_numbers = #tpu.dot_dimension_numbers<[1], [0], [0], [1], [0, 0, 1, 1], [], []>} : vector<64x32xf32>, vector<32x4xf32>, vector<64x4xf32> -> vector<64x4xf32>
      %c0_27 = arith.constant 0 : index
      %c0_28 = arith.constant 0 : index
      %30 = vector.load %arg11[%c0_27, %c0_28] : memref<1x4xf32, #tpu.memory_space<vmem>>, vector<1x4xf32>
      %31 = vector.broadcast %30 : vector<1x4xf32> to vector<64x4xf32>
      %32 = arith.addf %29, %31 : vector<64x4xf32>
      %c0_29 = arith.constant 0 : index
      %c0_30 = arith.constant 0 : index
      %33 = vector.load %arg12[%c0_29, %c0_30] : memref<64x4xf32, #tpu.memory_space<vmem>>, vector<64x4xf32>
      tpu.vector_store %arg12[%c0_29, %c0_30], %32 {strides = array<i32>} : memref<64x4xf32, #tpu.memory_space<vmem>>, vector<64x4xf32>,
      %c0_31 = arith.constant 0 : index
      %c0_32 = arith.constant 0 : index
      %34 = vector.load %arg10[%c0_31, %c0_32] : memref<32x4xf32, #tpu.memory_space<vmem>>, vector<32x4xf32>
      %cst_33 = arith.constant dense<0.000000e+00> : vector<64x4xf32>
      %35 = tpu.matmul %27, %34, %cst_33 {dimension_numbers = #tpu.dot_dimension_numbers<[1], [0], [0], [1], [0, 0, 1, 1], [], []>} : vector<64x32xf32>, vector<32x4xf32>, vector<64x4xf32> -> vector<64x4xf32>
      %c0_34 = arith.constant 0 : index
      %c0_35 = arith.constant 0 : index
      %36 = vector.load %arg13[%c0_34, %c0_35] : memref<64x4xf32, #tpu.memory_space<vmem>>, vector<64x4xf32>
      tpu.vector_store %arg13[%c0_34, %c0_35], %35 {strides = array<i32>} : memref<64x4xf32, #tpu.memory_space<vmem>>, vector<64x4xf32>,
    } else {
    }
    return
  }
  func.func @transform_0(%arg0: i32, %arg1: i32) -> (i32, i32) {
    %c0_i32 = arith.constant 0 : i32
    return %arg0, %arg1 : i32, i32
  }
  func.func @transform_1(%arg0: i32, %arg1: i32) -> (i32, i32) {
    %c0_i32 = arith.constant 0 : i32
    %c0_i32_0 = arith.constant 0 : i32
    return %arg0, %c0_i32 : i32, i32
  }
  func.func @transform_2(%arg0: i32, %arg1: i32) -> (i32, i32) {
    %c0_i32 = arith.constant 0 : i32
    %c0_i32_0 = arith.constant 0 : i32
    return %arg1, %c0_i32 : i32, i32
  }
  func.func @transform_3(%arg0: i32, %arg1: i32) -> (i32, i32) {
    %c0_i32 = arith.constant 0 : i32
    %c0_i32_0 = arith.constant 0 : i32
    return %arg0, %c0_i32 : i32, i32
  }
  func.func @transform_4(%arg0: i32, %arg1: i32) -> (i32, i32) {
    %c0_i32 = arith.constant 0 : i32
    %c0_i32_0 = arith.constant 0 : i32
    %c0_i32_1 = arith.constant 0 : i32
    return %c0_i32, %c0_i32_0 : i32, i32
  }
  func.func @transform_5(%arg0: i32, %arg1: i32) -> (i32, i32) {
    %c0_i32 = arith.constant 0 : i32
    %c0_i32_0 = arith.constant 0 : i32
    %c0_i32_1 = arith.constant 0 : i32
    return %c0_i32, %c0_i32_0 : i32, i32
  }
  func.func @transform_6(%arg0: i32, %arg1: i32) -> (i32, i32) {
    %c0_i32 = arith.constant 0 : i32
    %c0_i32_0 = arith.constant 0 : i32
    %c0_i32_1 = arith.constant 0 : i32
    return %c0_i32, %c0_i32_0 : i32, i32
  }
  func.func @transform_7(%arg0: i32, %arg1: i32) -> (i32, i32) {
    %c0_i32 = arith.constant 0 : i32
    %c0_i32_0 = arith.constant 0 : i32
    %c0_i32_1 = arith.constant 0 : i32
    return %c0_i32, %c0_i32_0 : i32, i32
  }
  func.func @transform_8(%arg0: i32, %arg1: i32) -> (i32, i32) {
    %c0_i32 = arith.constant 0 : i32
    %c0_i32_0 = arith.constant 0 : i32
    %c0_i32_1 = arith.constant 0 : i32
    return %c0_i32, %c0_i32_0 : i32, i32
  }
  func.func @transform_9(%arg0: i32, %arg1: i32) -> (i32, i32) {
    %c0_i32 = arith.constant 0 : i32
    %c0_i32_0 = arith.constant 0 : i32
    %c0_i32_1 = arith.constant 0 : i32
    return %c0_i32, %c0_i32_0 : i32, i32
  }
  func.func @transform_10(%arg0: i32, %arg1: i32) -> (i32, i32) {
    %c0_i32 = arith.constant 0 : i32
    %c0_i32_0 = arith.constant 0 : i32
    return %arg0, %c0_i32 : i32, i32
  }
  func.func @transform_11(%arg0: i32, %arg1: i32) -> (i32, i32) {
    %c0_i32 = arith.constant 0 : i32
    %c0_i32_0 = arith.constant 0 : i32
    return %arg0, %c0_i32 : i32, i32
  }
}

</mosaic_0001>

<llo_original>
// kernel: tpu_custom_call.1
$region0: #{tpu_custom_call.1}
  #allocation0 [shape = 'u32[]', space=smem, size = 0x4, offset = 0x4, fixed_abs, tag = 'smem constant byte address 0x4 - core index']
  #allocation1 [shape = 'u32[144,128]{1,0:T(1,128)}', space=vmem, size = 0x12000, scoped, tag = 'internal scratch']
  #allocation2 [shape = 'f32[64,16]{1,0:T(8,128)}', space=vmem, size = 0x8000, scoped, tag = 'scratch operand']
  %s0 = inlined_call_operand.vmem [shape: bf16[384,384], index: 0, kind: input, shape index: {}]
  %s1 = inlined_call_operand.vmem [shape: f32[384,16], index: 1, kind: input, shape index: {}]
  %s2 = inlined_call_operand.vmem [shape: f32[384,16], index: 2, kind: input, shape index: {}]
  %s3 = inlined_call_operand.vmem [shape: f32[384,1], index: 3, kind: input, shape index: {}]
  %s4 = inlined_call_operand.vmem [shape: f32[16,32], index: 4, kind: input, shape index: {}]
  %s5 = inlined_call_operand.vmem [shape: f32[16,32], index: 5, kind: input, shape index: {}]
  %s6 = inlined_call_operand.vmem [shape: f32[1,32], index: 6, kind: input, shape index: {}]
  %s7 = inlined_call_operand.vmem [shape: f32[32,4], index: 7, kind: input, shape index: {}]
  %s8 = inlined_call_operand.vmem [shape: f32[32,4], index: 8, kind: input, shape index: {}]
  %s9 = inlined_call_operand.vmem [shape: f32[1,4], index: 9, kind: input, shape index: {}]
  %s10 = inlined_call_operand.vmem [shape: f32[384,4], index: 10, kind: output, shape index: {0}]
  %s11 = inlined_call_operand.vmem [shape: f32[384,4], index: 11, kind: output, shape index: {1}]
  %12 = xla_tuple %s10, %s11
  %s13 = sld [smem:[#allocation0]]
  $region130: #{tpu_custom_call.1} parent=0
    _
  %s15 = ssub.s32 1, %s13
  %s16 = scalar_select 0, %s15, %s13
  $region1: #{tpu_custom_call.1} parent=0
    #allocation3 [shape = 'u8[32768]{0}', space=vmem, size = 0x8000, scoped, tag = 'input window, operand 0']
    loop: start=0, step=1, limit=20
    $region2: #{tpu_custom_call.1} parent=1 // loop_pre_header
      _
    $region3: #{tpu_custom_call.1} parent=1 // loop_header
      %s18 = sphi 0, %s22
      %p19 = scmp.ge.s32.totalorder %s18, 20
      %s25 = sphi 0, %s37
      %s26 = sphi 0, %s33
      %s27 = sphi 0, %s25
      %s28 = sphi 0, %s26
      %s29 = sphi 0, %s27
      %s30 = sphi 0, %s28
      %s42 = sphi 0, %s44
      %s45 = sphi 0, %s42
      %s46 = sphi 0, %s45
      %s62 = sphi 0, %s46
      %s68 = sphi 0, %s70
      %s71 = sphi 0, %s68
      %s72 = sphi 0, %s71
      %s88 = sphi 0, %s72
      %s94 = sphi 0, %s96
      %s97 = sphi 0, %s94
      %s98 = sphi 0, %s97
      %s114 = sphi 0, %s98
      %s120 = sphi 0, %s122
      %s123 = sphi 0, %s120
      %s124 = sphi 0, %s123
      %s140 = sphi 0, %s124
      %s144 = sphi 0, %s144
      %s146 = sphi 0, %s144
      %s147 = sphi 0, %s146
      %s161 = sphi 0, %s147
      %s165 = sphi 0, %s165
      %s167 = sphi 0, %s165
      %s168 = sphi 0, %s167
      %s182 = sphi 0, %s168
      %s186 = sphi 0, %s186
      %s188 = sphi 0, %s186
      %s189 = sphi 0, %s188
      %s203 = sphi 0, %s189
      %s207 = sphi 0, %s207
      %s209 = sphi 0, %s207
      %s210 = sphi 0, %s209
      %s224 = sphi 0, %s210
      %s228 = sphi 0, %s228
      %s230 = sphi 0, %s228
      %s231 = sphi 0, %s230
      %s245 = sphi 0, %s231
      %s249 = sphi 0, %s249
      %s251 = sphi 0, %s249
      %s252 = sphi 0, %s251
      %s266 = sphi 0, %s252
      %s272 = sphi 0, %s274
      %s275 = sphi 0, %s272
      %s276 = sphi 0, %s275
      %s292 = sphi 0, %s276
      %s298 = sphi 0, %s300
      %s301 = sphi 0, %s298
      %s302 = sphi 0, %s301
      %s318 = sphi 0, %s302
    $region4: #{tpu_custom_call.1} parent=1 // loop_header_branch
      %21 = sbr.rel (%p19) target = $region8
    $region5: #{tpu_custom_call.1} parent=1 // loop_body
      %s23 = ssub.s32 %s18, 1
      %s24 = ssub.s32 %s18, 2
      %s31 = sadd.s32 1, %s26
      %p32 = scmp.ge.s32.totalorder %s31, 3
      %s33 = scalar_select %p32, 0, %s31
      %s34 = sadd.s32 1, %s25
      %s35 = scalar_select %p32, %s34, %s25
      %p36 = scmp.ge.s32.totalorder %s35, 6
      %s37 = scalar_select %p36, 0, %s35
      %s38 = ssub.s32 %s25, %s37
      %s39 = ssub.s32 %s26, %s33
      %s40 = sor.u32 %s38, %s39
      %p41 = scmp.eq.s32.totalorder %s40, 0
      %s43 = sadd.s32 %s42, 1
      %s44 = scalar_select %p41, %s42, %s43
      %p47 = pneg %p41
      %p48 = scmp.eq.s32.totalorder %s18, 17
      %p49 = por %p47, %p48
      %p50 = scmp.ne.s32.totalorder %s42, %s45
      %p51 = scmp.eq.s32.totalorder %s18, 0
      %p52 = por %p50, %p51
      %p53 = scmp.ne.s32.totalorder %s42, %s45
      %p54 = scmp.eq.s32.totalorder %s23, 17
      %p55 = por %p53, %p54
      %p56 = scmp.ne.s32.totalorder %s45, %s46
      %p57 = scmp.eq.s32.totalorder %s23, 0
      %p58 = por %p56, %p57
      %p59 = scmp.ne.s32.totalorder %s45, %s46
      %p60 = scmp.eq.s32.totalorder %s24, 17
      %p61 = por %p59, %p60
      %p63 = scmp.ne.s32.totalorder %s46, %s62
      %p64 = scmp.eq.s32.totalorder %s24, 0
      %p65 = por %p63, %p64
      %s66 = ssub.s32 %s25, %s37
      %p67 = scmp.eq.s32.totalorder %s66, 0
      %s69 = sadd.s32 %s68, 1
      %s70 = scalar_select %p67, %s68, %s69
      %p73 = pneg %p67
      %p74 = scmp.eq.s32.totalorder %s18, 17
      %p75 = por %p73, %p74
      %p76 = scmp.ne.s32.totalorder %s68, %s71
      %p77 = scmp.eq.s32.totalorder %s18, 0
      %p78 = por %p76, %p77
      %p79 = scmp.ne.s32.totalorder %s68, %s71
      %p80 = scmp.eq.s32.totalorder %s23, 17
      %p81 = por %p79, %p80
      %p82 = scmp.ne.s32.totalorder %s71, %s72
      %p83 = scmp.eq.s32.totalorder %s23, 0
      %p84 = por %p82, %p83
      %p85 = scmp.ne.s32.totalorder %s71, %s72
      %p86 = scmp.eq.s32.totalorder %s24, 17
      %p87 = por %p85, %p86
      %p89 = scmp.ne.s32.totalorder %s72, %s88
      %p90 = scmp.eq.s32.totalorder %s24, 0
      %p91 = por %p89, %p90
      %s92 = ssub.s32 %s26, %s33
      %p93 = scmp.eq.s32.totalorder %s92, 0
      %s95 = sadd.s32 %s94, 1
      %s96 = scalar_select %p93, %s94, %s95
      %p99 = pneg %p93
      %p100 = scmp.eq.s32.totalorder %s18, 17
      %p101 = por %p99, %p100
      %p102 = scmp.ne.s32.totalorder %s94, %s97
      %p103 = scmp.eq.s32.totalorder %s18, 0
      %p104 = por %p102, %p103
      %p105 = scmp.ne.s32.totalorder %s94, %s97
      %p106 = scmp.eq.s32.totalorder %s23, 17
      %p107 = por %p105, %p106
      %p108 = scmp.ne.s32.totalorder %s97, %s98
      %p109 = scmp.eq.s32.totalorder %s23, 0
      %p110 = por %p108, %p109
      %p111 = scmp.ne.s32.totalorder %s97, %s98
      %p112 = scmp.eq.s32.totalorder %s24, 17
      %p113 = por %p111, %p112
      %p115 = scmp.ne.s32.totalorder %s98, %s114
      %p116 = scmp.eq.s32.totalorder %s24, 0
      %p117 = por %p115, %p116
      %s118 = ssub.s32 %s25, %s37
      %p119 = scmp.eq.s32.totalorder %s118, 0
      %s121 = sadd.s32 %s120, 1
      %s122 = scalar_select %p119, %s120, %s121
      %p125 = pneg %p119
      %p126 = scmp.eq.s32.totalorder %s18, 17
      %p127 = por %p125, %p126
      %p128 = scmp.ne.s32.totalorder %s120, %s123
      %p129 = scmp.eq.s32.totalorder %s18, 0
      %p130 = por %p128, %p129
      %p131 = scmp.ne.s32.totalorder %s120, %s123
      %p132 = scmp.eq.s32.totalorder %s23, 17
      %p133 = por %p131, %p132
      %p134 = scmp.ne.s32.totalorder %s123, %s124
      %p135 = scmp.eq.s32.totalorder %s23, 0
      %p136 = por %p134, %p135
      %p137 = scmp.ne.s32.totalorder %s123, %s124
      %p138 = scmp.eq.s32.totalorder %s24, 17
      %p139 = por %p137, %p138
      %p141 = scmp.ne.s32.totalorder %s124, %s140
      %p142 = scmp.eq.s32.totalorder %s24, 0
      %p143 = por %p141, %p142
      %s145 = sadd.s32 %s144, 1
      %p148 = scmp.eq.s32.totalorder %s18, 17
      %p149 = scmp.ne.s32.totalorder %s144, %s146
      %p150 = scmp.eq.s32.totalorder %s18, 0
      %p151 = por %p149, %p150
      %p152 = scmp.ne.s32.totalorder %s144, %s146
      %p153 = scmp.eq.s32.totalorder %s23, 17
      %p154 = por %p152, %p153
      %p155 = scmp.ne.s32.totalorder %s146, %s147
      %p156 = scmp.eq.s32.totalorder %s23, 0
      %p157 = por %p155, %p156
      %p158 = scmp.ne.s32.totalorder %s146, %s147
      %p159 = scmp.eq.s32.totalorder %s24, 17
      %p160 = por %p158, %p159
      %p162 = scmp.ne.s32.totalorder %s147, %s161
      %p163 = scmp.eq.s32.totalorder %s24, 0
      %p164 = por %p162, %p163
      %s166 = sadd.s32 %s165, 1
      %p169 = scmp.eq.s32.totalorder %s18, 17
      %p170 = scmp.ne.s32.totalorder %s165, %s167
      %p171 = scmp.eq.s32.totalorder %s18, 0
      %p172 = por %p170, %p171
      %p173 = scmp.ne.s32.totalorder %s165, %s167
      %p174 = scmp.eq.s32.totalorder %s23, 17
      %p175 = por %p173, %p174
      %p176 = scmp.ne.s32.totalorder %s167, %s168
      %p177 = scmp.eq.s32.totalorder %s23, 0
      %p178 = por %p176, %p177
      %p179 = scmp.ne.s32.totalorder %s167, %s168
      %p180 = scmp.eq.s32.totalorder %s24, 17
      %p181 = por %p179, %p180
      %p183 = scmp.ne.s32.totalorder %s168, %s182
      %p184 = scmp.eq.s32.totalorder %s24, 0
      %p185 = por %p183, %p184
      %s187 = sadd.s32 %s186, 1
      %p190 = scmp.eq.s32.totalorder %s18, 17
      %p191 = scmp.ne.s32.totalorder %s186, %s188
      %p192 = scmp.eq.s32.totalorder %s18, 0
      %p193 = por %p191, %p192
      %p194 = scmp.ne.s32.totalorder %s186, %s188
      %p195 = scmp.eq.s32.totalorder %s23, 17
      %p196 = por %p194, %p195
      %p197 = scmp.ne.s32.totalorder %s188, %s189
      %p198 = scmp.eq.s32.totalorder %s23, 0
      %p199 = por %p197, %p198
      %p200 = scmp.ne.s32.totalorder %s188, %s189
      %p201 = scmp.eq.s32.totalorder %s24, 17
      %p202 = por %p200, %p201
      %p204 = scmp.ne.s32.totalorder %s189, %s203
      %p205 = scmp.eq.s32.totalorder %s24, 0
      %p206 = por %p204, %p205
      %s208 = sadd.s32 %s207, 1
      %p211 = scmp.eq.s32.totalorder %s18, 17
      %p212 = scmp.ne.s32.totalorder %s207, %s209
      %p213 = scmp.eq.s32.totalorder %s18, 0
      %p214 = por %p212, %p213
      %p215 = scmp.ne.s32.totalorder %s207, %s209
      %p216 = scmp.eq.s32.totalorder %s23, 17
      %p217 = por %p215, %p216
      %p218 = scmp.ne.s32.totalorder %s209, %s210
      %p219 = scmp.eq.s32.totalorder %s23, 0
      %p220 = por %p218, %p219
      %p221 = scmp.ne.s32.totalorder %s209, %s210
      %p222 = scmp.eq.s32.totalorder %s24, 17
      %p223 = por %p221, %p222
      %p225 = scmp.ne.s32.totalorder %s210, %s224
      %p226 = scmp.eq.s32.totalorder %s24, 0
      %p227 = por %p225, %p226
      %s229 = sadd.s32 %s228, 1
      %p232 = scmp.eq.s32.totalorder %s18, 17
      %p233 = scmp.ne.s32.totalorder %s228, %s230
      %p234 = scmp.eq.s32.totalorder %s18, 0
      %p235 = por %p233, %p234
      %p236 = scmp.ne.s32.totalorder %s228, %s230
      %p237 = scmp.eq.s32.totalorder %s23, 17
      %p238 = por %p236, %p237
      %p239 = scmp.ne.s32.totalorder %s230, %s231
      %p240 = scmp.eq.s32.totalorder %s23, 0
      %p241 = por %p239, %p240
      %p242 = scmp.ne.s32.totalorder %s230, %s231
      %p243 = scmp.eq.s32.totalorder %s24, 17
      %p244 = por %p242, %p243
      %p246 = scmp.ne.s32.totalorder %s231, %s245
      %p247 = scmp.eq.s32.totalorder %s24, 0
      %p248 = por %p246, %p247
      %s250 = sadd.s32 %s249, 1
      %p253 = scmp.eq.s32.totalorder %s18, 17
      %p254 = scmp.ne.s32.totalorder %s249, %s251
      %p255 = scmp.eq.s32.totalorder %s18, 0
      %p256 = por %p254, %p255
      %p257 = scmp.ne.s32.totalorder %s249, %s251
      %p258 = scmp.eq.s32.totalorder %s23, 17
      %p259 = por %p257, %p258
      %p260 = scmp.ne.s32.totalorder %s251, %s252
      %p261 = scmp.eq.s32.totalorder %s23, 0
      %p262 = por %p260, %p261
      %p263 = scmp.ne.s32.totalorder %s251, %s252
      %p264 = scmp.eq.s32.totalorder %s24, 17
      %p265 = por %p263, %p264
      %p267 = scmp.ne.s32.totalorder %s252, %s266
      %p268 = scmp.eq.s32.totalorder %s24, 0
      %p269 = por %p267, %p268
      %s270 = ssub.s32 %s25, %s37
      %p271 = scmp.eq.s32.totalorder %s270, 0
      %s273 = sadd.s32 %s272, 1
      %s274 = scalar_select %p271, %s272, %s273
      %p277 = pneg %p271
      %p278 = scmp.eq.s32.totalorder %s18, 17
      %p279 = por %p277, %p278
      %p280 = scmp.ne.s32.totalorder %s272, %s275
      %p281 = scmp.eq.s32.totalorder %s18, 0
      %p282 = por %p280, %p281
      %p283 = scmp.ne.s32.totalorder %s272, %s275
      %p284 = scmp.eq.s32.totalorder %s23, 17
      %p285 = por %p283, %p284
      %p286 = scmp.ne.s32.totalorder %s275, %s276
      %p287 = scmp.eq.s32.totalorder %s23, 0
      %p288 = por %p286, %p287
      %p289 = scmp.ne.s32.totalorder %s275, %s276
      %p290 = scmp.eq.s32.totalorder %s24, 17
      %p291 = por %p289, %p290
      %p293 = scmp.ne.s32.totalorder %s276, %s292
      %p294 = scmp.eq.s32.totalorder %s24, 0
      %p295 = por %p293, %p294
      %s296 = ssub.s32 %s25, %s37
      %p297 = scmp.eq.s32.totalorder %s296, 0
      %s299 = sadd.s32 %s298, 1
      %s300 = scalar_select %p297, %s298, %s299
      %p303 = pneg %p297
      %p304 = scmp.eq.s32.totalorder %s18, 17
      %p305 = por %p303, %p304
      %p306 = scmp.ne.s32.totalorder %s298, %s301
      %p307 = scmp.eq.s32.totalorder %s18, 0
      %p308 = por %p306, %p307
      %p309 = scmp.ne.s32.totalorder %s298, %s301
      %p310 = scmp.eq.s32.totalorder %s23, 17
      %p311 = por %p309, %p310
      %p312 = scmp.ne.s32.totalorder %s301, %s302
      %p313 = scmp.eq.s32.totalorder %s23, 0
      %p314 = por %p312, %p313
      %p315 = scmp.ne.s32.totalorder %s301, %s302
      %p316 = scmp.eq.s32.totalorder %s24, 17
      %p317 = por %p315, %p316
      %p319 = scmp.ne.s32.totalorder %s302, %s318
      %p320 = scmp.eq.s32.totalorder %s24, 0
      %p321 = por %p319, %p320
      %p322 = scmp.le.s32.totalorder 1, %s18
      %p323 = scmp.lt.s32.totalorder %s18, 19
      %p324 = pnand %p322, %p323
      %p325 = pneg %p324
      // Predicated region
      $region9: #{tpu_custom_call.1} parent=5 // pred_check
        _
      $region10: #{tpu_custom_call.1} parent=5 // pred_check_branch
        %327 = sbr.rel (%p324) target = $region12
      $region11: #{tpu_custom_call.1} parent=5 // pred_region
        %s328 = ssub.s32 %s18, 1
        // Predicated region
        $region13: #{tpu_custom_call.1} parent=11 // pred_check
          %p329 = pneg %p157
        $region14: #{tpu_custom_call.1} parent=11 // pred_check_branch
          %331 = sbr.rel (%p329) target = $region16
        $region15: #{tpu_custom_call.1} parent=11 // pred_region
          _
        $region16: #{tpu_custom_call.1} parent=11 // pred_fallthru
          _
        // Predicated region
        $region17: #{tpu_custom_call.1} parent=11 // pred_check
          %p332 = pneg %p178
        $region18: #{tpu_custom_call.1} parent=11 // pred_check_branch
          %334 = sbr.rel (%p332) target = $region20
        $region19: #{tpu_custom_call.1} parent=11 // pred_region
          _
        $region20: #{tpu_custom_call.1} parent=11 // pred_fallthru
          _
        // Predicated region
        $region21: #{tpu_custom_call.1} parent=11 // pred_check
          %p335 = pneg %p199
        $region22: #{tpu_custom_call.1} parent=11 // pred_check_branch
          %337 = sbr.rel (%p335) target = $region24
        $region23: #{tpu_custom_call.1} parent=11 // pred_region
          _
        $region24: #{tpu_custom_call.1} parent=11 // pred_fallthru
          _
        // Predicated region
        $region25: #{tpu_custom_call.1} parent=11 // pred_check
          %p338 = pneg %p220
        $region26: #{tpu_custom_call.1} parent=11 // pred_check_branch
          %340 = sbr.rel (%p338) target = $region28
        $region27: #{tpu_custom_call.1} parent=11 // pred_region
          _
        $region28: #{tpu_custom_call.1} parent=11 // pred_fallthru
          _
        // Predicated region
        $region29: #{tpu_custom_call.1} parent=11 // pred_check
          %p341 = pneg %p241
        $region30: #{tpu_custom_call.1} parent=11 // pred_check_branch
          %343 = sbr.rel (%p341) target = $region32
        $region31: #{tpu_custom_call.1} parent=11 // pred_region
          _
        $region32: #{tpu_custom_call.1} parent=11 // pred_fallthru
          _
        // Predicated region
        $region33: #{tpu_custom_call.1} parent=11 // pred_check
          %p344 = pneg %p262
        $region34: #{tpu_custom_call.1} parent=11 // pred_check_branch
          %346 = sbr.rel (%p344) target = $region36
        $region35: #{tpu_custom_call.1} parent=11 // pred_region
          _
        $region36: #{tpu_custom_call.1} parent=11 // pred_fallthru
          _
      $region12: #{tpu_custom_call.1} parent=5 // pred_fallthru
        _
      %p347 = scmp.lt.s32.totalorder %s18, 18
      // Predicated region
      $region37: #{tpu_custom_call.1} parent=5 // pred_check
        %p348 = pneg %p347
      $region38: #{tpu_custom_call.1} parent=5 // pred_check_branch
        %350 = sbr.rel (%p348) target = $region40
      $region39: #{tpu_custom_call.1} parent=5 // pred_region
        // Predicated region
        $region41: #{tpu_custom_call.1} parent=39 // pred_check
          %p351 = pneg %p52
        $region42: #{tpu_custom_call.1} parent=39 // pred_check_branch
          %353 = sbr.rel (%p351) target = $region44
        $region43: #{tpu_custom_call.1} parent=39 // pred_region
          %s354 = sand.u32 %s42, 1
          %s355 = sand.u32 %s42, 1
          %s356 = smul.addr %s355, 32
          %s357 = scalar_lea.vmem [#allocation3], %s356
          %s358 = smul.u32 8, %s25
          %s359 = smul.addr %s358, 3
          %s360 = sadd.s32 %s26, %s359
          %s361 = smul.addr %s360, 4
          %s362 = scalar_lea.vmem %s0, %s361
          // Predicated region
          $region45: #{tpu_custom_call.1} parent=43 // pred_check
            _
          $region46: #{tpu_custom_call.1} parent=43 // pred_check_branch
            %364 = sbr.rel (0) target = $region48
          $region47: #{tpu_custom_call.1} parent=43 // pred_region
            // Predicated region
            $region49: #{tpu_custom_call.1} parent=47 // pred_check
              _
            $region50: #{tpu_custom_call.1} parent=47 // pred_check_branch
              %366 = sbr.rel target = $region52
            $region51: #{tpu_custom_call.1} parent=47 // pred_region
              // Predicated region
              $region64: #{tpu_custom_call.1} parent=51 // pred_check
                _
              $region65: #{tpu_custom_call.1} parent=51 // pred_check_branch
                %396 = sbr.rel (0) target = $region67
              $region66: #{tpu_custom_call.1} parent=51 // pred_region
                loop: start=0, step=1, limit=1
                $region68: #{tpu_custom_call.1} parent=66 // loop_pre_header
                  _
                $region69: #{tpu_custom_call.1} parent=66 // loop_header
                  %s398 = sphi 0, %s402
                  %p399 = scmp.ge.s32.totalorder %s398, 1
                  %s403 = sphi %s362, %s362
                  %s404 = sphi %s357, %s357
                $region70: #{tpu_custom_call.1} parent=66 // loop_header_branch
                  %401 = sbr.rel (%p399) target = $region74
                $region71: #{tpu_custom_call.1} parent=66 // loop_body
                  _
                $region72: #{tpu_custom_call.1} parent=66 // loop_footer
                  %s402 = sadd.s32 1, %s398
                $region73: #{tpu_custom_call.1} parent=66 // loop_footer_branch
                  %397 = sbr.rel target = $region69
                $region74: #{tpu_custom_call.1} parent=66 // loop_exit
                  _
                %s406 = ssub.s32 16, 1
                loop: start=0, step=1, limit=1
                $region75: #{tpu_custom_call.1} parent=66 // loop_pre_header
                  _
                $region76: #{tpu_custom_call.1} parent=66 // loop_header
                  %s408 = sphi 0, %s412
                  %p409 = scmp.ge.s32.totalorder %s408, 1
                  %s413 = sphi %s362, %s362
                  %s414 = sphi %s357, %s357
                $region77: #{tpu_custom_call.1} parent=66 // loop_header_branch
                  %411 = sbr.rel (%p409) target = $region81
                $region78: #{tpu_custom_call.1} parent=66 // loop_body
                  %v415 = vld [vmem:[%s413] sm:%s406]
                  %416 = vst [vmem:[%s414] sm:%s406] %v415
                  %v417 = vld [vmem:[%s413 + $0xc] sm:%s406]
                  %418 = vst [vmem:[%s414 + $0x4] sm:%s406] %v417
                  %v419 = vld [vmem:[%s413 + $0x18] sm:%s406]
                  %420 = vst [vmem:[%s414 + $0x8] sm:%s406] %v419
                  %v421 = vld [vmem:[%s413 + $0x24] sm:%s406]
                  %422 = vst [vmem:[%s414 + $0xc] sm:%s406] %v421
                  %v423 = vld [vmem:[%s413 + $0x30] sm:%s406]
                  %424 = vst [vmem:[%s414 + $0x10] sm:%s406] %v423
                  %v425 = vld [vmem:[%s413 + $0x3c] sm:%s406]
                  %426 = vst [vmem:[%s414 + $0x14] sm:%s406] %v425
                  %v427 = vld [vmem:[%s413 + $0x48] sm:%s406]
                  %428 = vst [vmem:[%s414 + $0x18] sm:%s406] %v427
                  %v429 = vld [vmem:[%s413 + $0x54] sm:%s406]
                  %430 = vst [vmem:[%s414 + $0x1c] sm:%s406] %v429
                $region79: #{tpu_custom_call.1} parent=66 // loop_footer
                  %s412 = sadd.s32 1, %s408
                $region80: #{tpu_custom_call.1} parent=66 // loop_footer_branch
                  %407 = sbr.rel target = $region76
                $region81: #{tpu_custom_call.1} parent=66 // loop_exit
                  _
              $region67: #{tpu_custom_call.1} parent=51 // pred_fallthru
                _
            $region52: #{tpu_custom_call.1} parent=47 // pred_fallthru
              _
            // Predicated region
            $region53: #{tpu_custom_call.1} parent=47 // pred_check
              _
            $region54: #{tpu_custom_call.1} parent=47 // pred_check_branch
              %368 = sbr.rel (0) target = $region56
            $region55: #{tpu_custom_call.1} parent=47 // pred_region
              %s370 = ssub.s32 16, 1
              loop: start=0, step=1, limit=1
              $region57: #{tpu_custom_call.1} parent=55 // loop_pre_header
                _
              $region58: #{tpu_custom_call.1} parent=55 // loop_header
                %s372 = sphi 0, %s376
                %p373 = scmp.ge.s32.totalorder %s372, 1
                %s377 = sphi %s362, %s362
                %s378 = sphi %s357, %s357
              $region59: #{tpu_custom_call.1} parent=55 // loop_header_branch
                %375 = sbr.rel (%p373) target = $region63
              $region60: #{tpu_custom_call.1} parent=55 // loop_body
                %v379 = vld [vmem:[%s377] sm:%s370]
                %380 = vst [vmem:[%s378] sm:%s370] %v379
                %v381 = vld [vmem:[%s377 + $0xc] sm:%s370]
                %382 = vst [vmem:[%s378 + $0x4] sm:%s370] %v381
                %v383 = vld [vmem:[%s377 + $0x18] sm:%s370]
                %384 = vst [vmem:[%s378 + $0x8] sm:%s370] %v383
                %v385 = vld [vmem:[%s377 + $0x24] sm:%s370]
                %386 = vst [vmem:[%s378 + $0xc] sm:%s370] %v385
                %v387 = vld [vmem:[%s377 + $0x30] sm:%s370]
                %388 = vst [vmem:[%s378 + $0x10] sm:%s370] %v387
                %v389 = vld [vmem:[%s377 + $0x3c] sm:%s370]
                %390 = vst [vmem:[%s378 + $0x14] sm:%s370] %v389
                %v391 = vld [vmem:[%s377 + $0x48] sm:%s370]
                %392 = vst [vmem:[%s378 + $0x18] sm:%s370] %v391
                %v393 = vld [vmem:[%s377 + $0x54] sm:%s370]
                %394 = vst [vmem:[%s378 + $0x1c] sm:%s370] %v393
              $region61: #{tpu_custom_call.1} parent=55 // loop_footer
                %s376 = sadd.s32 1, %s372
              $region62: #{tpu_custom_call.1} parent=55 // loop_footer_branch
                %371 = sbr.rel target = $region58
              $region63: #{tpu_custom_call.1} parent=55 // loop_exit
                _
            $region56: #{tpu_custom_call.1} parent=47 // pred_fallthru
              _
          $region48: #{tpu_custom_call.1} parent=43 // pred_fallthru
            _
          %431 = vnop
        $region44: #{tpu_custom_call.1} parent=39 // pred_fallthru
          _
        // Predicated region
        $region82: #{tpu_custom_call.1} parent=39 // pred_check
          %p432 = pneg %p78
        $region83: #{tpu_custom_call.1} parent=39 // pred_check_branch
          %434 = sbr.rel (%p432) target = $region85
        $region84: #{tpu_custom_call.1} parent=39 // pred_region
          %s435 = smul.u32 8, %s25
          %p436 = scmp.lt.s32.totalorder %s435, 47
          %s437 = scalar_select %p436, %s435, 47
          %s438 = smul.addr %s437, 8
          %s439 = scalar_lea.vmem %s1, %s438
          %s440 = smul.u32 8, %s25
        $region85: #{tpu_custom_call.1} parent=39 // pred_fallthru
          _
        // Predicated region
        $region86: #{tpu_custom_call.1} parent=39 // pred_check
          %p441 = pneg %p104
        $region87: #{tpu_custom_call.1} parent=39 // pred_check_branch
          %443 = sbr.rel (%p441) target = $region89
        $region88: #{tpu_custom_call.1} parent=39 // pred_region
          %s444 = smul.u32 16, %s26
          %p445 = scmp.lt.s32.totalorder %s444, 47
          %s446 = scalar_select %p445, %s444, 47
          %s447 = smul.addr %s446, 8
          %s448 = scalar_lea.vmem %s2, %s447
          %s449 = smul.u32 16, %s26
        $region89: #{tpu_custom_call.1} parent=39 // pred_fallthru
          _
        // Predicated region
        $region90: #{tpu_custom_call.1} parent=39 // pred_check
          %p450 = pneg %p130
        $region91: #{tpu_custom_call.1} parent=39 // pred_check_branch
          %452 = sbr.rel (%p450) target = $region93
        $region92: #{tpu_custom_call.1} parent=39 // pred_region
          %s453 = smul.u32 8, %s25
          %p454 = scmp.lt.s32.totalorder %s453, 47
          %s455 = scalar_select %p454, %s453, 47
          %s456 = smul.addr %s455, 8
          %s457 = scalar_lea.vmem %s3, %s456
          %s458 = smul.u32 8, %s25
        $region93: #{tpu_custom_call.1} parent=39 // pred_fallthru
          _
      $region40: #{tpu_custom_call.1} parent=5 // pred_fallthru
        _
      %p459 = scmp.le.s32.totalorder 1, %s18
      %p460 = scmp.lt.s32.totalorder %s18, 19
      %p461 = pnand %p459, %p460
      %p462 = pneg %p461
      // Predicated region
      $region94: #{tpu_custom_call.1} parent=5 // pred_check
        _
      $region95: #{tpu_custom_call.1} parent=5 // pred_check_branch
        %464 = sbr.rel (%p461) target = $region97
      $region96: #{tpu_custom_call.1} parent=5 // pred_region
        %s465 = ssub.s32 %s18, 1
        %s466 = sand.u32 %s45, 1
        %s467 = sand.u32 %s45, 1
        %s468 = smul.addr %s467, 32
        %s469 = scalar_lea.vmem [#allocation3], %s468
        // Predicated region
        $region98: #{tpu_custom_call.1} parent=96 // pred_check
          %p470 = pneg %p58
        $region99: #{tpu_custom_call.1} parent=96 // pred_check_branch
          %472 = sbr.rel (%p470) target = $region101
        $region100: #{tpu_custom_call.1} parent=96 // pred_region
          _
        $region101: #{tpu_custom_call.1} parent=96 // pred_fallthru
          _
        %s473 = sand.u32 %s45, 1
        %s474 = sand.u32 %s45, 1
        %s475 = smul.addr %s474, 32
        %s476 = scalar_lea.vmem [#allocation3], %s475
        %p477 = pneg %p58
        %p478 = pneg %p55
        %s479 = smul.u32 8, %s27
        %p480 = scmp.lt.s32.totalorder %s479, 47
        %s481 = scalar_select %p480, %s479, 47
        %s482 = smul.addr %s481, 8
        %s483 = scalar_lea.vmem %s1, %s482
        %p484 = pneg %p84
        %p485 = pneg %p81
        %s486 = smul.u32 16, %s28
        %p487 = scmp.lt.s32.totalorder %s486, 47
        %s488 = scalar_select %p487, %s486, 47
        %s489 = smul.addr %s488, 8
        %s490 = scalar_lea.vmem %s2, %s489
        %p491 = pneg %p110
        %p492 = pneg %p107
        %s493 = smul.u32 8, %s27
        %p494 = scmp.lt.s32.totalorder %s493, 47
        %s495 = scalar_select %p494, %s493, 47
        %s496 = smul.addr %s495, 8
        %s497 = scalar_lea.vmem %s3, %s496
        %p498 = pneg %p136
        %p499 = pneg %p133
        %p500 = pneg %p157
        %p501 = pneg %p154
        %p502 = pneg %p178
        %p503 = pneg %p175
        %p504 = pneg %p199
        %p505 = pneg %p196
        %p506 = pneg %p220
        %p507 = pneg %p217
        %p508 = pneg %p241
        %p509 = pneg %p238
        %p510 = pneg %p262
        %p511 = pneg %p259
        %p512 = pneg %p288
        %p513 = pneg %p285
        %s514 = smul.u32 8, %s27
        %p515 = scmp.lt.s32.totalorder %s514, 47
        %s516 = scalar_select %p515, %s514, 47
        %s517 = smul.addr %s516, 8
        %s518 = scalar_lea.vmem %s10, %s517
        %p519 = pneg %p314
        %p520 = pneg %p311
        %s521 = smul.u32 8, %s27
        %p522 = scmp.lt.s32.totalorder %s521, 47
        %s523 = scalar_select %p522, %s521, 47
        %s524 = smul.addr %s523, 8
        %s525 = scalar_lea.vmem %s11, %s524
        %s526 = smul.u32 8, %s27
        %s527 = smul.u32 8, %s27
        %p528 = scmp.lt.s32.totalorder %s527, 47
        %s529 = scalar_select %p528, %s527, 47
        %s530 = smul.addr %s529, 8
        %s531 = scalar_lea.vmem %s1, %s530
        %s532 = smul.u32 8, %s27
        %s533 = smul.u32 16, %s28
        %p534 = scmp.lt.s32.totalorder %s533, 47
        %s535 = scalar_select %p534, %s533, 47
        %s536 = smul.addr %s535, 8
        %s537 = scalar_lea.vmem %s2, %s536
        %s538 = smul.u32 16, %s28
        %s539 = smul.u32 8, %s27
        %p540 = scmp.lt.s32.totalorder %s539, 47
        %s541 = scalar_select %p540, %s539, 47
        %s542 = smul.addr %s541, 8
        %s543 = scalar_lea.vmem %s3, %s542
        %s544 = smul.u32 8, %s27
        %s545 = smul.u32 8, %s27
        %p546 = scmp.lt.s32.totalorder %s545, 47
        %s547 = scalar_select %p546, %s545, 47
        %s548 = smul.addr %s547, 8
        %s549 = scalar_lea.vmem %s10, %s548
        %s550 = smul.u32 8, %s27
        %s551 = smul.u32 8, %s27
        %p552 = scmp.lt.s32.totalorder %s551, 47
        %s553 = scalar_select %p552, %s551, 47
        %s554 = smul.addr %s553, 8
        %s555 = scalar_lea.vmem %s11, %s554
        %s556 = smul.u32 8, %s27
        %p557 = scmp.eq.s32.totalorder %s28, 0
        // Predicated region
        $region102: #{tpu_custom_call.1} parent=96 // pred_check
          %p558 = pneg %p557
        $region103: #{tpu_custom_call.1} parent=96 // pred_check_branch
          %560 = sbr.rel (%p558) target = $region105
        $region104: #{tpu_custom_call.1} parent=96 // pred_region
          %vm561 = vcmask 130048
          %562 = vst.msk [vmem:[#allocation2] sm:$0xff] %vm561, 0.0
          %563 = vst.msk [vmem:[#allocation2 + $0x8] sm:$0xff] %vm561, 0.0
          %564 = vst.msk [vmem:[#allocation2 + $0x10] sm:$0xff] %vm561, 0.0
          %565 = vst.msk [vmem:[#allocation2 + $0x18] sm:$0xff] %vm561, 0.0
          %566 = vst.msk [vmem:[#allocation2 + $0x20] sm:$0xff] %vm561, 0.0
          %567 = vst.msk [vmem:[#allocation2 + $0x28] sm:$0xff] %vm561, 0.0
          %568 = vst.msk [vmem:[#allocation2 + $0x30] sm:$0xff] %vm561, 0.0
          %569 = vst.msk [vmem:[#allocation2 + $0x38] sm:$0xff] %vm561, 0.0
        $region105: #{tpu_custom_call.1} parent=96 // pred_fallthru
          _
        %v570 = vld [vmem:[#allocation2] sm:$0xff]
        %v571 = vld [vmem:[#allocation2 + $0x8] sm:$0xff]
        %v572 = vld [vmem:[#allocation2 + $0x10] sm:$0xff]
        %v573 = vld [vmem:[#allocation2 + $0x18] sm:$0xff]
        %v574 = vld [vmem:[#allocation2 + $0x20] sm:$0xff]
        %v575 = vld [vmem:[#allocation2 + $0x28] sm:$0xff]
        %v576 = vld [vmem:[#allocation2 + $0x30] sm:$0xff]
        %v577 = vld [vmem:[#allocation2 + $0x38] sm:$0xff]
        %v578 = vld [vmem:[%s469] sm:$0xf]
        %v579 = vld [vmem:[%s469 + $0x4] sm:$0xf]
        %v580 = vld [vmem:[%s469 + $0x8] sm:$0xf]
        %v581 = vld [vmem:[%s469 + $0xc] sm:$0xf]
        %v582 = vld [vmem:[%s469 + $0x10] sm:$0xf]
        %v583 = vld [vmem:[%s469 + $0x14] sm:$0xf]
        %v584 = vld [vmem:[%s469 + $0x18] sm:$0xf]
        %v585 = vld [vmem:[%s469 + $0x1c] sm:$0xf]
        %v586 = vunpack.c.l.bf16 %v578
        %v587 = vunpack.c.l.bf16 %v579
        %v588 = vunpack.c.l.bf16 %v580
        %v589 = vunpack.c.l.bf16 %v581
        %v590 = vunpack.c.l.bf16 %v582
        %v591 = vunpack.c.l.bf16 %v583
        %v592 = vunpack.c.l.bf16 %v584
        %v593 = vunpack.c.l.bf16 %v585
        %v594 = vld [vmem:[%s537] sm:$0xff]
        %v595 = vld [vmem:[%s537 + $0x8] sm:$0xff]
        %v596 = vld [vmem:[%s537 + $0x10] sm:$0xff]
        %v597 = vld [vmem:[%s537 + $0x18] sm:$0xff]
        %v598 = vld [vmem:[%s537 + $0x20] sm:$0xff]
        %v599 = vld [vmem:[%s537 + $0x28] sm:$0xff]
        %v600 = vld [vmem:[%s537 + $0x30] sm:$0xff]
        %v601 = vld [vmem:[%s537 + $0x38] sm:$0xff]
        %v602 = vld [vmem:[%s537 + $0x40] sm:$0xff]
        %v603 = vld [vmem:[%s537 + $0x48] sm:$0xff]
        %v604 = vld [vmem:[%s537 + $0x50] sm:$0xff]
        %v605 = vld [vmem:[%s537 + $0x58] sm:$0xff]
        %v606 = vld [vmem:[%s537 + $0x60] sm:$0xff]
        %v607 = vld [vmem:[%s537 + $0x68] sm:$0xff]
        %v608 = vld [vmem:[%s537 + $0x70] sm:$0xff]
        %v609 = vld [vmem:[%s537 + $0x78] sm:$0xff]
        %610 = vmatprep.subr.mxu0 0.0
        %611 = vmatpush1.msra.mxu0 %v609
        %612 = vmatprep.subr.mxu0 0.0
        %613 = vmatpush1.msra.mxu0 %v608
        %614 = vmatprep.subr.mxu0 0.0
        %615 = vmatpush1.msra.mxu0 %v607
        %616 = vmatprep.subr.mxu0 0.0
        %617 = vmatpush1.msra.mxu0 %v606
        %618 = vmatprep.subr.mxu0 0.0
        %619 = vmatpush1.msra.mxu0 %v605
        %620 = vmatprep.subr.mxu0 0.0
        %621 = vmatpush1.msra.mxu0 %v604
        %622 = vmatprep.subr.mxu0 0.0
        %623 = vmatpush1.msra.mxu0 %v603
        %624 = vmatprep.subr.mxu0 0.0
        %625 = vmatpush1.msra.mxu0 %v602
        %626 = vmatprep.subr.mxu0 0.0
        %627 = vmatpush1.msra.mxu0 %v601
        %628 = vmatprep.subr.mxu0 0.0
        %629 = vmatpush1.msra.mxu0 %v600
        %630 = vmatprep.subr.mxu0 0.0
        %631 = vmatpush1.msra.mxu0 %v599
        %632 = vmatprep.subr.mxu0 0.0
        %633 = vmatpush1.msra.mxu0 %v598
        %634 = vmatprep.subr.mxu0 0.0
        %635 = vmatpush1.msra.mxu0 %v597
        %636 = vmatprep.subr.mxu0 0.0
        %637 = vmatpush1.msra.mxu0 %v596
        %638 = vmatprep.subr.mxu0 0.0
        %639 = vmatpush1.msra.mxu0 %v595
        %640 = vmatprep.subr.mxu0 0.0
        %641 = vmatpush1.msra.mxu0 %v594
        %642 = vmatprep.subr.mxu0 0.0
        %643 = vmatpush2.msra.mxu0 0.0
        %644 = vmatprep.subr.mxu0 0.0
        %645 = vmatpush2.msra.mxu0 0.0
        %646 = vmatprep.subr.mxu0 0.0
        %647 = vmatpush2.msra.mxu0 0.0
        %648 = vmatprep.subr.mxu0 0.0
        %649 = vmatpush2.msra.mxu0 0.0
        %650 = vmatprep.subr.mxu0 0.0
        %651 = vmatpush2.msra.mxu0 0.0
        %652 = vmatprep.subr.mxu0 0.0
        %653 = vmatpush2.msra.mxu0 0.0
        %654 = vmatprep.subr.mxu0 0.0
        %655 = vmatpush2.msra.mxu0 0.0
        %656 = vmatprep.subr.mxu0 0.0
        %657 = vmatpush2.msra.mxu0 0.0
        %658 = vmatprep.subr.mxu0 0.0
        %659 = vmatpush2.msra.mxu0 0.0
        %660 = vmatprep.subr.mxu0 0.0
        %661 = vmatpush2.msra.mxu0 0.0
        %662 = vmatprep.subr.mxu0 0.0
        %663 = vmatpush2.msra.mxu0 0.0
        %664 = vmatprep.subr.mxu0 0.0
        %665 = vmatpush2.msra.mxu0 0.0
        %666 = vmatprep.subr.mxu0 0.0
        %667 = vmatpush2.msra.mxu0 0.0
        %668 = vmatprep.subr.mxu0 0.0
        %669 = vmatpush2.msra.mxu0 0.0
        %670 = vmatprep.subr.mxu0 0.0
        %671 = vmatpush2.msra.mxu0 0.0
        %672 = vmatprep.subr.mxu0 0.0
        %673 = vmatpush2.msra.mxu0 0.0
        %674 = vmatprep.mubr.f32.mxu0 0.0
        %675 = vmatmul.mubr.f32.gmra.mxu0 %v586
        %v676 = vpop.f32.mrf.mxu0
        %v677 = vadd.f32 0.0, %v676
        %v678 = vpop.f32.mrf.mxu0
        %679 = vmatprep.mubr.f32.mxu0 0.0
        %680 = vmatmul.mubr.f32.gmra.mxu0 %v587
        %v681 = vpop.f32.mrf.mxu0
        %v682 = vadd.f32 0.0, %v681
        %v683 = vpop.f32.mrf.mxu0
        %684 = vmatprep.mubr.f32.mxu0 0.0
        %685 = vmatmul.mubr.f32.gmra.mxu0 %v588
        %v686 = vpop.f32.mrf.mxu0
        %v687 = vadd.f32 0.0, %v686
        %v688 = vpop.f32.mrf.mxu0
        %689 = vmatprep.mubr.f32.mxu0 0.0
        %690 = vmatmul.mubr.f32.gmra.mxu0 %v589
        %v691 = vpop.f32.mrf.mxu0
        %v692 = vadd.f32 0.0, %v691
        %v693 = vpop.f32.mrf.mxu0
        %694 = vmatprep.mubr.f32.mxu0 0.0
        %695 = vmatmul.mubr.f32.gmra.mxu0 %v590
        %v696 = vpop.f32.mrf.mxu0
        %v697 = vadd.f32 0.0, %v696
        %v698 = vpop.f32.mrf.mxu0
        %699 = vmatprep.mubr.f32.mxu0 0.0
        %700 = vmatmul.mubr.f32.gmra.mxu0 %v591
        %v701 = vpop.f32.mrf.mxu0
        %v702 = vadd.f32 0.0, %v701
        %v703 = vpop.f32.mrf.mxu0
        %704 = vmatprep.mubr.f32.mxu0 0.0
        %705 = vmatmul.mubr.f32.gmra.mxu0 %v592
        %v706 = vpop.f32.mrf.mxu0
        %v707 = vadd.f32 0.0, %v706
        %v708 = vpop.f32.mrf.mxu0
        %709 = vmatprep.mubr.f32.mxu0 0.0
        %710 = vmatmul.mubr.f32.gmra.mxu0 %v593
        %v711 = vpop.f32.mrf.mxu0
        %v712 = vadd.f32 0.0, %v711
        %v713 = vpop.f32.mrf.mxu0
        %714 = vdwg.mxu0
        %v715 = vadd.f32 %v570, %v677
        %v716 = vadd.f32 %v571, %v682
        %v717 = vadd.f32 %v572, %v687
        %v718 = vadd.f32 %v573, %v692
        %v719 = vadd.f32 %v574, %v697
        %v720 = vadd.f32 %v575, %v702
        %v721 = vadd.f32 %v576, %v707
        %v722 = vadd.f32 %v577, %v712
        %vm723 = vcmask 130048
        %724 = vst.msk [vmem:[#allocation2] sm:$0xff] %vm723, %v715
        %725 = vst.msk [vmem:[#allocation2 + $0x8] sm:$0xff] %vm723, %v716
        %726 = vst.msk [vmem:[#allocation2 + $0x10] sm:$0xff] %vm723, %v717
        %727 = vst.msk [vmem:[#allocation2 + $0x18] sm:$0xff] %vm723, %v718
        %728 = vst.msk [vmem:[#allocation2 + $0x20] sm:$0xff] %vm723, %v719
        %729 = vst.msk [vmem:[#allocation2 + $0x28] sm:$0xff] %vm723, %v720
        %730 = vst.msk [vmem:[#allocation2 + $0x30] sm:$0xff] %vm723, %v721
        %731 = vst.msk [vmem:[#allocation2 + $0x38] sm:$0xff] %vm723, %v722
        %p732 = scmp.eq.s32.totalorder %s28, 2
        // Predicated region
        $region106: #{tpu_custom_call.1} parent=96 // pred_check
          %p733 = pneg %p732
        $region107: #{tpu_custom_call.1} parent=96 // pred_check_branch
          %735 = sbr.rel (%p733) target = $region109
        $region108: #{tpu_custom_call.1} parent=96 // pred_region
          %v736 = vld [vmem:[%s543] sm:$0xff]
          %v737 = vld [vmem:[%s543 + $0x8] sm:$0xff]
          %v738 = vld [vmem:[%s543 + $0x10] sm:$0xff]
          %v739 = vld [vmem:[%s543 + $0x18] sm:$0xff]
          %v740 = vld [vmem:[%s543 + $0x20] sm:$0xff]
          %v741 = vld [vmem:[%s543 + $0x28] sm:$0xff]
          %v742 = vld [vmem:[%s543 + $0x30] sm:$0xff]
          %v743 = vld [vmem:[%s543 + $0x38] sm:$0xff]
          %v744 = vld [vmem:[#allocation2] sm:$0xff]
          %v745 = vld [vmem:[#allocation2 + $0x8] sm:$0xff]
          %v746 = vld [vmem:[#allocation2 + $0x10] sm:$0xff]
          %v747 = vld [vmem:[#allocation2 + $0x18] sm:$0xff]
          %v748 = vld [vmem:[#allocation2 + $0x20] sm:$0xff]
          %v749 = vld [vmem:[#allocation2 + $0x28] sm:$0xff]
          %v750 = vld [vmem:[#allocation2 + $0x30] sm:$0xff]
          %v751 = vld [vmem:[#allocation2 + $0x38] sm:$0xff]
          %753 = vset.pattern.permute.xlu0 0
          %754 = vperm.xlu0 %753, %v736
          %v755 = vpop.permute.xlu0 %754
          %758 = vset.pattern.permute.xlu0 0
          %759 = vperm.xlu0 %758, %v737
          %v760 = vpop.permute.xlu0 %759
          %763 = vset.pattern.permute.xlu0 0
          %764 = vperm.xlu0 %763, %v738
          %v765 = vpop.permute.xlu0 %764
          %768 = vset.pattern.permute.xlu0 0
          %769 = vperm.xlu0 %768, %v739
          %v770 = vpop.permute.xlu0 %769
          %773 = vset.pattern.permute.xlu0 0
          %774 = vperm.xlu0 %773, %v740
          %v775 = vpop.permute.xlu0 %774
          %778 = vset.pattern.permute.xlu0 0
          %779 = vperm.xlu0 %778, %v741
          %v780 = vpop.permute.xlu0 %779
          %783 = vset.pattern.permute.xlu0 0
          %784 = vperm.xlu0 %783, %v742
          %v785 = vpop.permute.xlu0 %784
          %788 = vset.pattern.permute.xlu0 0
          %789 = vperm.xlu0 %788, %v743
          %v790 = vpop.permute.xlu0 %789
          %v792 = vmul.f32 %v755, %v744
          %v793 = vmul.f32 %v760, %v745
          %v794 = vmul.f32 %v765, %v746
          %v795 = vmul.f32 %v770, %v747
          %v796 = vmul.f32 %v775, %v748
          %v797 = vmul.f32 %v780, %v749
          %v798 = vmul.f32 %v785, %v750
          %v799 = vmul.f32 %v790, %v751
          %v800 = vld [vmem:[%s531] sm:$0xff]
          %v801 = vld [vmem:[%s531 + $0x8] sm:$0xff]
          %v802 = vld [vmem:[%s531 + $0x10] sm:$0xff]
          %v803 = vld [vmem:[%s531 + $0x18] sm:$0xff]
          %v804 = vld [vmem:[%s531 + $0x20] sm:$0xff]
          %v805 = vld [vmem:[%s531 + $0x28] sm:$0xff]
          %v806 = vld [vmem:[%s531 + $0x30] sm:$0xff]
          %v807 = vld [vmem:[%s531 + $0x38] sm:$0xff]
          %v808 = vld [vmem:[%s4] sm:$0xff]
          %v809 = vld [vmem:[%s4 + $0x8] sm:$0xff]
          %v810 = vld [vmem:[%s5] sm:$0xff]
          %v811 = vld [vmem:[%s5 + $0x8] sm:$0xff]
          %v813 = vsel %vm723, %v792, 0
          %v816 = vsel %vm723, %v793, 0
          %v819 = vsel %vm723, %v794, 0
          %v822 = vsel %vm723, %v795, 0
          %v825 = vsel %vm723, %v796, 0
          %v828 = vsel %vm723, %v797, 0
          %v831 = vsel %vm723, %v798, 0
          %v834 = vsel %vm723, %v799, 0
          %836 = vmatprep.subr.mxu0 0.0
          %837 = vmatpush1.msra.mxu0 0.0
          %838 = vmatprep.subr.mxu0 0.0
          %839 = vmatpush1.msra.mxu0 0.0
          %840 = vmatprep.subr.mxu0 0.0
          %841 = vmatpush1.msra.mxu0 0.0
          %842 = vmatprep.subr.mxu0 0.0
          %843 = vmatpush1.msra.mxu0 0.0
          %844 = vmatprep.subr.mxu0 0.0
          %845 = vmatpush1.msra.mxu0 0.0
          %846 = vmatprep.subr.mxu0 0.0
          %847 = vmatpush1.msra.mxu0 0.0
          %848 = vmatprep.subr.mxu0 0.0
          %849 = vmatpush1.msra.mxu0 0.0
          %850 = vmatprep.subr.mxu0 0.0
          %851 = vmatpush1.msra.mxu0 0.0
          %852 = vmatprep.subr.mxu0 0.0
          %853 = vmatpush1.msra.mxu0 0.0
          %854 = vmatprep.subr.mxu0 0.0
          %855 = vmatpush1.msra.mxu0 0.0
          %856 = vmatprep.subr.mxu0 0.0
          %857 = vmatpush1.msra.mxu0 0.0
          %858 = vmatprep.subr.mxu0 0.0
          %859 = vmatpush1.msra.mxu0 0.0
          %860 = vmatprep.subr.mxu0 0.0
          %861 = vmatpush1.msra.mxu0 0.0
          %862 = vmatprep.subr.mxu0 0.0
          %863 = vmatpush1.msra.mxu0 0.0
          %864 = vmatprep.subr.mxu0 0.0
          %865 = vmatpush1.msra.mxu0 %v811
          %866 = vmatprep.subr.mxu0 0.0
          %867 = vmatpush1.msra.mxu0 %v810
          %868 = vmatprep.subr.mxu0 0.0
          %869 = vmatpush2.msra.mxu0 0.0
          %870 = vmatprep.subr.mxu0 0.0
          %871 = vmatpush2.msra.mxu0 0.0
          %872 = vmatprep.subr.mxu0 0.0
          %873 = vmatpush2.msra.mxu0 0.0
          %874 = vmatprep.subr.mxu0 0.0
          %875 = vmatpush2.msra.mxu0 0.0
          %876 = vmatprep.subr.mxu0 0.0
          %877 = vmatpush2.msra.mxu0 0.0
          %878 = vmatprep.subr.mxu0 0.0
          %879 = vmatpush2.msra.mxu0 0.0
          %880 = vmatprep.subr.mxu0 0.0
          %881 = vmatpush2.msra.mxu0 0.0
          %882 = vmatprep.subr.mxu0 0.0
          %883 = vmatpush2.msra.mxu0 0.0
          %884 = vmatprep.subr.mxu0 0.0
          %885 = vmatpush2.msra.mxu0 0.0
          %886 = vmatprep.subr.mxu0 0.0
          %887 = vmatpush2.msra.mxu0 0.0
          %888 = vmatprep.subr.mxu0 0.0
          %889 = vmatpush2.msra.mxu0 0.0
          %890 = vmatprep.subr.mxu0 0.0
          %891 = vmatpush2.msra.mxu0 0.0
          %892 = vmatprep.subr.mxu0 0.0
          %893 = vmatpush2.msra.mxu0 0.0
          %894 = vmatprep.subr.mxu0 0.0
          %895 = vmatpush2.msra.mxu0 0.0
          %896 = vmatprep.subr.mxu0 0.0
          %897 = vmatpush2.msra.mxu0 0.0
          %898 = vmatprep.subr.mxu0 0.0
          %899 = vmatpush2.msra.mxu0 0.0
          %900 = vmatprep.mubr.f32.mxu0 0.0
          %901 = vmatmul.mubr.f32.gmra.mxu0 %v813
          %v902 = vpop.f32.mrf.mxu0
          %v903 = vadd.f32 0.0, %v902
          %v904 = vpop.f32.mrf.mxu0
          %905 = vmatprep.mubr.f32.mxu0 0.0
          %906 = vmatmul.mubr.f32.gmra.mxu0 %v816
          %v907 = vpop.f32.mrf.mxu0
          %v908 = vadd.f32 0.0, %v907
          %v909 = vpop.f32.mrf.mxu0
          %910 = vmatprep.mubr.f32.mxu0 0.0
          %911 = vmatmul.mubr.f32.gmra.mxu0 %v819
          %v912 = vpop.f32.mrf.mxu0
          %v913 = vadd.f32 0.0, %v912
          %v914 = vpop.f32.mrf.mxu0
          %915 = vmatprep.mubr.f32.mxu0 0.0
          %916 = vmatmul.mubr.f32.gmra.mxu0 %v822
          %v917 = vpop.f32.mrf.mxu0
          %v918 = vadd.f32 0.0, %v917
          %v919 = vpop.f32.mrf.mxu0
          %920 = vmatprep.mubr.f32.mxu0 0.0
          %921 = vmatmul.mubr.f32.gmra.mxu0 %v825
          %v922 = vpop.f32.mrf.mxu0
          %v923 = vadd.f32 0.0, %v922
          %v924 = vpop.f32.mrf.mxu0
          %925 = vmatprep.mubr.f32.mxu0 0.0
          %926 = vmatmul.mubr.f32.gmra.mxu0 %v828
          %v927 = vpop.f32.mrf.mxu0
          %v928 = vadd.f32 0.0, %v927
          %v929 = vpop.f32.mrf.mxu0
          %930 = vmatprep.mubr.f32.mxu0 0.0
          %931 = vmatmul.mubr.f32.gmra.mxu0 %v831
          %v932 = vpop.f32.mrf.mxu0
          %v933 = vadd.f32 0.0, %v932
          %v934 = vpop.f32.mrf.mxu0
          %935 = vmatprep.mubr.f32.mxu0 0.0
          %936 = vmatmul.mubr.f32.gmra.mxu0 %v834
          %v937 = vpop.f32.mrf.mxu0
          %v938 = vadd.f32 0.0, %v937
          %v939 = vpop.f32.mrf.mxu0
          %940 = vdwg.mxu0
          %v942 = vsel %vm723, %v800, 0
          %v945 = vsel %vm723, %v801, 0
          %v948 = vsel %vm723, %v802, 0
          %v951 = vsel %vm723, %v803, 0
          %v954 = vsel %vm723, %v804, 0
          %v957 = vsel %vm723, %v805, 0
          %v960 = vsel %vm723, %v806, 0
          %v963 = vsel %vm723, %v807, 0
          %965 = vmatprep.subr.mxu0 0.0
          %966 = vmatpush1.msra.mxu0 0.0
          %967 = vmatprep.subr.mxu0 0.0
          %968 = vmatpush1.msra.mxu0 0.0
          %969 = vmatprep.subr.mxu0 0.0
          %970 = vmatpush1.msra.mxu0 0.0
          %971 = vmatprep.subr.mxu0 0.0
          %972 = vmatpush1.msra.mxu0 0.0
          %973 = vmatprep.subr.mxu0 0.0
          %974 = vmatpush1.msra.mxu0 0.0
          %975 = vmatprep.subr.mxu0 0.0
          %976 = vmatpush1.msra.mxu0 0.0
          %977 = vmatprep.subr.mxu0 0.0
          %978 = vmatpush1.msra.mxu0 0.0
          %979 = vmatprep.subr.mxu0 0.0
          %980 = vmatpush1.msra.mxu0 0.0
          %981 = vmatprep.subr.mxu0 0.0
          %982 = vmatpush1.msra.mxu0 0.0
          %983 = vmatprep.subr.mxu0 0.0
          %984 = vmatpush1.msra.mxu0 0.0
          %985 = vmatprep.subr.mxu0 0.0
          %986 = vmatpush1.msra.mxu0 0.0
          %987 = vmatprep.subr.mxu0 0.0
          %988 = vmatpush1.msra.mxu0 0.0
          %989 = vmatprep.subr.mxu0 0.0
          %990 = vmatpush1.msra.mxu0 0.0
          %991 = vmatprep.subr.mxu0 0.0
          %992 = vmatpush1.msra.mxu0 0.0
          %993 = vmatprep.subr.mxu0 0.0
          %994 = vmatpush1.msra.mxu0 %v809
          %995 = vmatprep.subr.mxu0 0.0
          %996 = vmatpush1.msra.mxu0 %v808
          %997 = vmatprep.subr.mxu0 0.0
          %998 = vmatpush2.msra.mxu0 0.0
          %999 = vmatprep.subr.mxu0 0.0
          %1000 = vmatpush2.msra.mxu0 0.0
          %1001 = vmatprep.subr.mxu0 0.0
          %1002 = vmatpush2.msra.mxu0 0.0
          %1003 = vmatprep.subr.mxu0 0.0
          %1004 = vmatpush2.msra.mxu0 0.0
          %1005 = vmatprep.subr.mxu0 0.0
          %1006 = vmatpush2.msra.mxu0 0.0
          %1007 = vmatprep.subr.mxu0 0.0
          %1008 = vmatpush2.msra.mxu0 0.0
          %1009 = vmatprep.subr.mxu0 0.0
          %1010 = vmatpush2.msra.mxu0 0.0
          %1011 = vmatprep.subr.mxu0 0.0
          %1012 = vmatpush2.msra.mxu0 0.0
          %1013 = vmatprep.subr.mxu0 0.0
          %1014 = vmatpush2.msra.mxu0 0.0
          %1015 = vmatprep.subr.mxu0 0.0
          %1016 = vmatpush2.msra.mxu0 0.0
          %1017 = vmatprep.subr.mxu0 0.0
          %1018 = vmatpush2.msra.mxu0 0.0
          %1019 = vmatprep.subr.mxu0 0.0
          %1020 = vmatpush2.msra.mxu0 0.0
          %1021 = vmatprep.subr.mxu0 0.0
          %1022 = vmatpush2.msra.mxu0 0.0
          %1023 = vmatprep.subr.mxu0 0.0
          %1024 = vmatpush2.msra.mxu0 0.0
          %1025 = vmatprep.subr.mxu0 0.0
          %1026 = vmatpush2.msra.mxu0 0.0
          %1027 = vmatprep.subr.mxu0 0.0
          %1028 = vmatpush2.msra.mxu0 0.0
          %1029 = vmatprep.mubr.f32.mxu0 0.0
          %1030 = vmatmul.mubr.f32.gmra.mxu0 %v942
          %v1031 = vpop.f32.mrf.mxu0
          %v1032 = vadd.f32 %v903, %v1031
          %v1033 = vpop.f32.mrf.mxu0
          %1034 = vmatprep.mubr.f32.mxu0 0.0
          %1035 = vmatmul.mubr.f32.gmra.mxu0 %v945
          %v1036 = vpop.f32.mrf.mxu0
          %v1037 = vadd.f32 %v908, %v1036
          %v1038 = vpop.f32.mrf.mxu0
          %1039 = vmatprep.mubr.f32.mxu0 0.0
          %1040 = vmatmul.mubr.f32.gmra.mxu0 %v948
          %v1041 = vpop.f32.mrf.mxu0
          %v1042 = vadd.f32 %v913, %v1041
          %v1043 = vpop.f32.mrf.mxu0
          %1044 = vmatprep.mubr.f32.mxu0 0.0
          %1045 = vmatmul.mubr.f32.gmra.mxu0 %v951
          %v1046 = vpop.f32.mrf.mxu0
          %v1047 = vadd.f32 %v918, %v1046
          %v1048 = vpop.f32.mrf.mxu0
          %1049 = vmatprep.mubr.f32.mxu0 0.0
          %1050 = vmatmul.mubr.f32.gmra.mxu0 %v954
          %v1051 = vpop.f32.mrf.mxu0
          %v1052 = vadd.f32 %v923, %v1051
          %v1053 = vpop.f32.mrf.mxu0
          %1054 = vmatprep.mubr.f32.mxu0 0.0
          %1055 = vmatmul.mubr.f32.gmra.mxu0 %v957
          %v1056 = vpop.f32.mrf.mxu0
          %v1057 = vadd.f32 %v928, %v1056
          %v1058 = vpop.f32.mrf.mxu0
          %1059 = vmatprep.mubr.f32.mxu0 0.0
          %1060 = vmatmul.mubr.f32.gmra.mxu0 %v960
          %v1061 = vpop.f32.mrf.mxu0
          %v1062 = vadd.f32 %v933, %v1061
          %v1063 = vpop.f32.mrf.mxu0
          %1064 = vmatprep.mubr.f32.mxu0 0.0
          %1065 = vmatmul.mubr.f32.gmra.mxu0 %v963
          %v1066 = vpop.f32.mrf.mxu0
          %v1067 = vadd.f32 %v938, %v1066
          %v1068 = vpop.f32.mrf.mxu0
          %1069 = vdwg.mxu0
          %v1070 = vld [vmem:[%s6] sm:$0x1]
          %v1072 = vlaneseq
          %v1073 = vshrl.u32 %v1072, 7
          %v1074 = vsub.s32 0, %v1073
          %v1075 = vrot.slane %v1070, %v1074
          %v1077 = vadd.f32 %v1032, %v1075
          %v1078 = vadd.f32 %v1037, %v1075
          %v1079 = vadd.f32 %v1042, %v1075
          %v1080 = vadd.f32 %v1047, %v1075
          %v1081 = vadd.f32 %v1052, %v1075
          %v1082 = vadd.f32 %v1057, %v1075
          %v1083 = vadd.f32 %v1062, %v1075
          %v1084 = vadd.f32 %v1067, %v1075
          %v1085 = vmax.f32 %v1077, 0.0
          %v1086 = vmax.f32 %v1078, 0.0
          %v1087 = vmax.f32 %v1079, 0.0
          %v1088 = vmax.f32 %v1080, 0.0
          %v1089 = vmax.f32 %v1081, 0.0
          %v1090 = vmax.f32 %v1082, 0.0
          %v1091 = vmax.f32 %v1083, 0.0
          %v1092 = vmax.f32 %v1084, 0.0
          %v1093 = vld [vmem:[%s7] sm:$0xff]
          %v1094 = vld [vmem:[%s7 + $0x8] sm:$0xff]
          %v1095 = vld [vmem:[%s7 + $0x10] sm:$0xff]
          %v1096 = vld [vmem:[%s7 + $0x18] sm:$0xff]
          %v1097 = vld [vmem:[%s9] sm:$0x1]
          %v1099 = vlaneseq
          %v1100 = vshrl.u32 %v1099, 7
          %v1101 = vsub.s32 0, %v1100
          %v1102 = vrot.slane %v1097, %v1101
          %vm1104 = vcmask 261120
          %v1106 = vsel %vm1104, %v1085, 0
          %v1109 = vsel %vm1104, %v1086, 0
          %v1112 = vsel %vm1104, %v1087, 0
          %v1115 = vsel %vm1104, %v1088, 0
          %v1118 = vsel %vm1104, %v1089, 0
          %v1121 = vsel %vm1104, %v1090, 0
          %v1124 = vsel %vm1104, %v1091, 0
          %v1127 = vsel %vm1104, %v1092, 0
          %1129 = vmatprep.subr.mxu0 0.0
          %1130 = vmatpush1.msra.mxu0 0.0
          %1131 = vmatprep.subr.mxu0 0.0
          %1132 = vmatpush1.msra.mxu0 0.0
          %1133 = vmatprep.subr.mxu0 0.0
          %1134 = vmatpush1.msra.mxu0 0.0
          %1135 = vmatprep.subr.mxu0 0.0
          %1136 = vmatpush1.msra.mxu0 0.0
          %1137 = vmatprep.subr.mxu0 0.0
          %1138 = vmatpush1.msra.mxu0 0.0
          %1139 = vmatprep.subr.mxu0 0.0
          %1140 = vmatpush1.msra.mxu0 0.0
          %1141 = vmatprep.subr.mxu0 0.0
          %1142 = vmatpush1.msra.mxu0 0.0
          %1143 = vmatprep.subr.mxu0 0.0
          %1144 = vmatpush1.msra.mxu0 0.0
          %1145 = vmatprep.subr.mxu0 0.0
          %1146 = vmatpush1.msra.mxu0 0.0
          %1147 = vmatprep.subr.mxu0 0.0
          %1148 = vmatpush1.msra.mxu0 0.0
          %1149 = vmatprep.subr.mxu0 0.0
          %1150 = vmatpush1.msra.mxu0 0.0
          %1151 = vmatprep.subr.mxu0 0.0
          %1152 = vmatpush1.msra.mxu0 0.0
          %1153 = vmatprep.subr.mxu0 0.0
          %1154 = vmatpush1.msra.mxu0 %v1096
          %1155 = vmatprep.subr.mxu0 0.0
          %1156 = vmatpush1.msra.mxu0 %v1095
          %1157 = vmatprep.subr.mxu0 0.0
          %1158 = vmatpush1.msra.mxu0 %v1094
          %1159 = vmatprep.subr.mxu0 0.0
          %1160 = vmatpush1.msra.mxu0 %v1093
          %1161 = vmatprep.subr.mxu0 0.0
          %1162 = vmatpush2.msra.mxu0 0.0
          %1163 = vmatprep.subr.mxu0 0.0
          %1164 = vmatpush2.msra.mxu0 0.0
          %1165 = vmatprep.subr.mxu0 0.0
          %1166 = vmatpush2.msra.mxu0 0.0
          %1167 = vmatprep.subr.mxu0 0.0
          %1168 = vmatpush2.msra.mxu0 0.0
          %1169 = vmatprep.subr.mxu0 0.0
          %1170 = vmatpush2.msra.mxu0 0.0
          %1171 = vmatprep.subr.mxu0 0.0
          %1172 = vmatpush2.msra.mxu0 0.0
          %1173 = vmatprep.subr.mxu0 0.0
          %1174 = vmatpush2.msra.mxu0 0.0
          %1175 = vmatprep.subr.mxu0 0.0
          %1176 = vmatpush2.msra.mxu0 0.0
          %1177 = vmatprep.subr.mxu0 0.0
          %1178 = vmatpush2.msra.mxu0 0.0
          %1179 = vmatprep.subr.mxu0 0.0
          %1180 = vmatpush2.msra.mxu0 0.0
          %1181 = vmatprep.subr.mxu0 0.0
          %1182 = vmatpush2.msra.mxu0 0.0
          %1183 = vmatprep.subr.mxu0 0.0
          %1184 = vmatpush2.msra.mxu0 0.0
          %1185 = vmatprep.subr.mxu0 0.0
          %1186 = vmatpush2.msra.mxu0 0.0
          %1187 = vmatprep.subr.mxu0 0.0
          %1188 = vmatpush2.msra.mxu0 0.0
          %1189 = vmatprep.subr.mxu0 0.0
          %1190 = vmatpush2.msra.mxu0 0.0
          %1191 = vmatprep.subr.mxu0 0.0
          %1192 = vmatpush2.msra.mxu0 0.0
          %1193 = vmatprep.mubr.f32.mxu0 0.0
          %1194 = vmatmul.mubr.f32.gmra.mxu0 %v1106
          %v1195 = vpop.f32.mrf.mxu0
          %v1196 = vadd.f32 %v1102, %v1195
          %v1197 = vpop.f32.mrf.mxu0
          %1198 = vmatprep.mubr.f32.mxu0 0.0
          %1199 = vmatmul.mubr.f32.gmra.mxu0 %v1109
          %v1200 = vpop.f32.mrf.mxu0
          %v1201 = vadd.f32 %v1102, %v1200
          %v1202 = vpop.f32.mrf.mxu0
          %1203 = vmatprep.mubr.f32.mxu0 0.0
          %1204 = vmatmul.mubr.f32.gmra.mxu0 %v1112
          %v1205 = vpop.f32.mrf.mxu0
          %v1206 = vadd.f32 %v1102, %v1205
          %v1207 = vpop.f32.mrf.mxu0
          %1208 = vmatprep.mubr.f32.mxu0 0.0
          %1209 = vmatmul.mubr.f32.gmra.mxu0 %v1115
          %v1210 = vpop.f32.mrf.mxu0
          %v1211 = vadd.f32 %v1102, %v1210
          %v1212 = vpop.f32.mrf.mxu0
          %1213 = vmatprep.mubr.f32.mxu0 0.0
          %1214 = vmatmul.mubr.f32.gmra.mxu0 %v1118
          %v1215 = vpop.f32.mrf.mxu0
          %v1216 = vadd.f32 %v1102, %v1215
          %v1217 = vpop.f32.mrf.mxu0
          %1218 = vmatprep.mubr.f32.mxu0 0.0
          %1219 = vmatmul.mubr.f32.gmra.mxu0 %v1121
          %v1220 = vpop.f32.mrf.mxu0
          %v1221 = vadd.f32 %v1102, %v1220
          %v1222 = vpop.f32.mrf.mxu0
          %1223 = vmatprep.mubr.f32.mxu0 0.0
          %1224 = vmatmul.mubr.f32.gmra.mxu0 %v1124
          %v1225 = vpop.f32.mrf.mxu0
          %v1226 = vadd.f32 %v1102, %v1225
          %v1227 = vpop.f32.mrf.mxu0
          %1228 = vmatprep.mubr.f32.mxu0 0.0
          %1229 = vmatmul.mubr.f32.gmra.mxu0 %v1127
          %v1230 = vpop.f32.mrf.mxu0
          %v1231 = vadd.f32 %v1102, %v1230
          %v1232 = vpop.f32.mrf.mxu0
          %1233 = vdwg.mxu0
          %vm1234 = vcmask 31744
          %1235 = vst.msk [vmem:[%s549] sm:$0xff] %vm1234, %v1196
          %1236 = vst.msk [vmem:[%s549 + $0x8] sm:$0xff] %vm1234, %v1201
          %1237 = vst.msk [vmem:[%s549 + $0x10] sm:$0xff] %vm1234, %v1206
          %1238 = vst.msk [vmem:[%s549 + $0x18] sm:$0xff] %vm1234, %v1211
          %1239 = vst.msk [vmem:[%s549 + $0x20] sm:$0xff] %vm1234, %v1216
          %1240 = vst.msk [vmem:[%s549 + $0x28] sm:$0xff] %vm1234, %v1221
          %1241 = vst.msk [vmem:[%s549 + $0x30] sm:$0xff] %vm1234, %v1226
          %1242 = vst.msk [vmem:[%s549 + $0x38] sm:$0xff] %vm1234, %v1231
          %v1243 = vld [vmem:[%s8] sm:$0xff]
          %v1244 = vld [vmem:[%s8 + $0x8] sm:$0xff]
          %v1245 = vld [vmem:[%s8 + $0x10] sm:$0xff]
          %v1246 = vld [vmem:[%s8 + $0x18] sm:$0xff]
          %1247 = vmatprep.subr.mxu0 0.0
          %1248 = vmatpush1.msra.mxu0 0.0
          %1249 = vmatprep.subr.mxu0 0.0
          %1250 = vmatpush1.msra.mxu0 0.0
          %1251 = vmatprep.subr.mxu0 0.0
          %1252 = vmatpush1.msra.mxu0 0.0
          %1253 = vmatprep.subr.mxu0 0.0
          %1254 = vmatpush1.msra.mxu0 0.0
          %1255 = vmatprep.subr.mxu0 0.0
          %1256 = vmatpush1.msra.mxu0 0.0
          %1257 = vmatprep.subr.mxu0 0.0
          %1258 = vmatpush1.msra.mxu0 0.0
          %1259 = vmatprep.subr.mxu0 0.0
          %1260 = vmatpush1.msra.mxu0 0.0
          %1261 = vmatprep.subr.mxu0 0.0
          %1262 = vmatpush1.msra.mxu0 0.0
          %1263 = vmatprep.subr.mxu0 0.0
          %1264 = vmatpush1.msra.mxu0 0.0
          %1265 = vmatprep.subr.mxu0 0.0
          %1266 = vmatpush1.msra.mxu0 0.0
          %1267 = vmatprep.subr.mxu0 0.0
          %1268 = vmatpush1.msra.mxu0 0.0
          %1269 = vmatprep.subr.mxu0 0.0
          %1270 = vmatpush1.msra.mxu0 0.0
          %1271 = vmatprep.subr.mxu0 0.0
          %1272 = vmatpush1.msra.mxu0 %v1246
          %1273 = vmatprep.subr.mxu0 0.0
          %1274 = vmatpush1.msra.mxu0 %v1245
          %1275 = vmatprep.subr.mxu0 0.0
          %1276 = vmatpush1.msra.mxu0 %v1244
          %1277 = vmatprep.subr.mxu0 0.0
          %1278 = vmatpush1.msra.mxu0 %v1243
          %1279 = vmatprep.subr.mxu0 0.0
          %1280 = vmatpush2.msra.mxu0 0.0
          %1281 = vmatprep.subr.mxu0 0.0
          %1282 = vmatpush2.msra.mxu0 0.0
          %1283 = vmatprep.subr.mxu0 0.0
          %1284 = vmatpush2.msra.mxu0 0.0
          %1285 = vmatprep.subr.mxu0 0.0
          %1286 = vmatpush2.msra.mxu0 0.0
          %1287 = vmatprep.subr.mxu0 0.0
          %1288 = vmatpush2.msra.mxu0 0.0
          %1289 = vmatprep.subr.mxu0 0.0
          %1290 = vmatpush2.msra.mxu0 0.0
          %1291 = vmatprep.subr.mxu0 0.0
          %1292 = vmatpush2.msra.mxu0 0.0
          %1293 = vmatprep.subr.mxu0 0.0
          %1294 = vmatpush2.msra.mxu0 0.0
          %1295 = vmatprep.subr.mxu0 0.0
          %1296 = vmatpush2.msra.mxu0 0.0
          %1297 = vmatprep.subr.mxu0 0.0
          %1298 = vmatpush2.msra.mxu0 0.0
          %1299 = vmatprep.subr.mxu0 0.0
          %1300 = vmatpush2.msra.mxu0 0.0
          %1301 = vmatprep.subr.mxu0 0.0
          %1302 = vmatpush2.msra.mxu0 0.0
          %1303 = vmatprep.subr.mxu0 0.0
          %1304 = vmatpush2.msra.mxu0 0.0
          %1305 = vmatprep.subr.mxu0 0.0
          %1306 = vmatpush2.msra.mxu0 0.0
          %1307 = vmatprep.subr.mxu0 0.0
          %1308 = vmatpush2.msra.mxu0 0.0
          %1309 = vmatprep.subr.mxu0 0.0
          %1310 = vmatpush2.msra.mxu0 0.0
          %1311 = vmatprep.mubr.f32.mxu0 0.0
          %1312 = vmatmul.mubr.f32.gmra.mxu0 %v1106
          %v1313 = vpop.f32.mrf.mxu0
          %v1314 = vadd.f32 0.0, %v1313
          %v1315 = vpop.f32.mrf.mxu0
          %1316 = vmatprep.mubr.f32.mxu0 0.0
          %1317 = vmatmul.mubr.f32.gmra.mxu0 %v1109
          %v1318 = vpop.f32.mrf.mxu0
          %v1319 = vadd.f32 0.0, %v1318
          %v1320 = vpop.f32.mrf.mxu0
          %1321 = vmatprep.mubr.f32.mxu0 0.0
          %1322 = vmatmul.mubr.f32.gmra.mxu0 %v1112
          %v1323 = vpop.f32.mrf.mxu0
          %v1324 = vadd.f32 0.0, %v1323
          %v1325 = vpop.f32.mrf.mxu0
          %1326 = vmatprep.mubr.f32.mxu0 0.0
          %1327 = vmatmul.mubr.f32.gmra.mxu0 %v1115
          %v1328 = vpop.f32.mrf.mxu0
          %v1329 = vadd.f32 0.0, %v1328
          %v1330 = vpop.f32.mrf.mxu0
          %1331 = vmatprep.mubr.f32.mxu0 0.0
          %1332 = vmatmul.mubr.f32.gmra.mxu0 %v1118
          %v1333 = vpop.f32.mrf.mxu0
          %v1334 = vadd.f32 0.0, %v1333
          %v1335 = vpop.f32.mrf.mxu0
          %1336 = vmatprep.mubr.f32.mxu0 0.0
          %1337 = vmatmul.mubr.f32.gmra.mxu0 %v1121
          %v1338 = vpop.f32.mrf.mxu0
          %v1339 = vadd.f32 0.0, %v1338
          %v1340 = vpop.f32.mrf.mxu0
          %1341 = vmatprep.mubr.f32.mxu0 0.0
          %1342 = vmatmul.mubr.f32.gmra.mxu0 %v1124
          %v1343 = vpop.f32.mrf.mxu0
          %v1344 = vadd.f32 0.0, %v1343
          %v1345 = vpop.f32.mrf.mxu0
          %1346 = vmatprep.mubr.f32.mxu0 0.0
          %1347 = vmatmul.mubr.f32.gmra.mxu0 %v1127
          %v1348 = vpop.f32.mrf.mxu0
          %v1349 = vadd.f32 0.0, %v1348
          %v1350 = vpop.f32.mrf.mxu0
          %1351 = vdwg.mxu0
          %1352 = vst.msk [vmem:[%s555] sm:$0xff] %vm1234, %v1314
          %1353 = vst.msk [vmem:[%s555 + $0x8] sm:$0xff] %vm1234, %v1319
          %1354 = vst.msk [vmem:[%s555 + $0x10] sm:$0xff] %vm1234, %v1324
          %1355 = vst.msk [vmem:[%s555 + $0x18] sm:$0xff] %vm1234, %v1329
          %1356 = vst.msk [vmem:[%s555 + $0x20] sm:$0xff] %vm1234, %v1334
          %1357 = vst.msk [vmem:[%s555 + $0x28] sm:$0xff] %vm1234, %v1339
          %1358 = vst.msk [vmem:[%s555 + $0x30] sm:$0xff] %vm1234, %v1344
          %1359 = vst.msk [vmem:[%s555 + $0x38] sm:$0xff] %vm1234, %v1349
        $region109: #{tpu_custom_call.1} parent=96 // pred_fallthru
          _
        %s1360 = smul.u32 8, %s27
        %p1361 = scmp.lt.s32.totalorder %s1360, 47
        %s1362 = scalar_select %p1361, %s1360, 47
        %s1363 = smul.addr %s1362, 8
        %s1364 = scalar_lea.vmem %s10, %s1363
        %s1365 = smul.u32 8, %s27
        %p1366 = scmp.lt.s32.totalorder %s1365, 47
        %s1367 = scalar_select %p1366, %s1365, 47
        %s1368 = smul.addr %s1367, 8
        %s1369 = scalar_lea.vmem %s11, %s1368
        // Predicated region
        $region110: #{tpu_custom_call.1} parent=96 // pred_check
          %p1370 = pneg %p285
        $region111: #{tpu_custom_call.1} parent=96 // pred_check_branch
          %1372 = sbr.rel (%p1370) target = $region113
        $region112: #{tpu_custom_call.1} parent=96 // pred_region
          %s1373 = smul.u32 8, %s27
        $region113: #{tpu_custom_call.1} parent=96 // pred_fallthru
          _
        // Predicated region
        $region114: #{tpu_custom_call.1} parent=96 // pred_check
          %p1374 = pneg %p311
        $region115: #{tpu_custom_call.1} parent=96 // pred_check_branch
          %1376 = sbr.rel (%p1374) target = $region117
        $region116: #{tpu_custom_call.1} parent=96 // pred_region
          %s1377 = smul.u32 8, %s27
        $region117: #{tpu_custom_call.1} parent=96 // pred_fallthru
          _
      $region97: #{tpu_custom_call.1} parent=5 // pred_fallthru
        _
      %p1378 = scmp.le.s32.totalorder 2, %s18
      // Predicated region
      $region118: #{tpu_custom_call.1} parent=5 // pred_check
        %p1379 = pneg %p1378
      $region119: #{tpu_custom_call.1} parent=5 // pred_check_branch
        %1381 = sbr.rel (%p1379) target = $region121
      $region120: #{tpu_custom_call.1} parent=5 // pred_region
        %s1382 = ssub.s32 %s18, 2
        // Predicated region
        $region122: #{tpu_custom_call.1} parent=120 // pred_check
          %p1383 = pneg %p291
        $region123: #{tpu_custom_call.1} parent=120 // pred_check_branch
          %1385 = sbr.rel (%p1383) target = $region125
        $region124: #{tpu_custom_call.1} parent=120 // pred_region
          %s1386 = smul.u32 8, %s29
          %p1387 = scmp.lt.s32.totalorder %s1386, 47
          %s1388 = scalar_select %p1387, %s1386, 47
          %s1389 = smul.addr %s1388, 8
          %s1390 = scalar_lea.vmem %s10, %s1389
        $region125: #{tpu_custom_call.1} parent=120 // pred_fallthru
          _
        // Predicated region
        $region126: #{tpu_custom_call.1} parent=120 // pred_check
          %p1391 = pneg %p317
        $region127: #{tpu_custom_call.1} parent=120 // pred_check_branch
          %1393 = sbr.rel (%p1391) target = $region129
        $region128: #{tpu_custom_call.1} parent=120 // pred_region
          %s1394 = smul.u32 8, %s29
          %p1395 = scmp.lt.s32.totalorder %s1394, 47
          %s1396 = scalar_select %p1395, %s1394, 47
          %s1397 = smul.addr %s1396, 8
          %s1398 = scalar_lea.vmem %s11, %s1397
        $region129: #{tpu_custom_call.1} parent=120 // pred_fallthru
          _
      $region121: #{tpu_custom_call.1} parent=5 // pred_fallthru
        _
    $region6: #{tpu_custom_call.1} parent=1 // loop_footer
      %s22 = sadd.s32 1, %s18
    $region7: #{tpu_custom_call.1} parent=1 // loop_footer_branch
      %17 = sbr.rel target = $region3
    $region8: #{tpu_custom_call.1} parent=1 // loop_exit
      _

</llo_original>
